<compile_context>
chip_gen: v7x
topology: tpu7x:2x2x1
jax: 0.10.0
libtpu: 0.0.40
codegen_flags: <defaults>
</compile_context>

<pallas_src>
import math

import jax
import jax.numpy as jnp
from jax.experimental import pallas as pl
from jax.experimental.pallas import tpu as pltpu


# -----------------------------------------------------------------------------
# Pallas kernel: fused MPP forward (masking -> embed -> encoder -> logits)
# -----------------------------------------------------------------------------
def _layernorm(z, g, b, eps=1e-5):
    mu = jnp.mean(z, axis=-1, keepdims=True)
    var = jnp.mean(jnp.square(z - mu), axis=-1, keepdims=True)
    return (z - mu) * jax.lax.rsqrt(var + eps) * g + b


def mpp_kernel(patches_ref, maskc_ref, token_ref,
               we_ref, pos_ref, vec_ref,
               wqkv_ref, wo_ref, w1_ref, b1_ref, w2_ref,
               wbits_ref, bbits_ref,
               out_ref):
    Bt, S, P = patches_ref.shape
    D = we_ref.shape[1]

    patches = patches_ref[...]            # (Bt, S, P) bf16
    m = maskc_ref[...]                    # (Bt, S, 1) f32, 1.0 where masked
    token = token_ref[...]                # (1, P)     bf16

    # replace_prob == 1  =>  every masked patch is replaced by the mask token
    # TODO(synk): replace_prob < 1 and random_patch_prob paths are omitted.
    masked = jnp.where(m > 0.0, token, patches)          # (Bt, S, P) bf16
    x2 = masked.reshape(Bt * S, P)                       # fold batch into M

    # packed per-feature vectors: biases + LayerNorm affine params (f32)
    vec = vec_ref[...]                                   # (10, D)
    b_emb, g1, bn1 = vec[0:1], vec[1:2], vec[2:3]
    bq, bk, bv, bo = vec[3:4], vec[4:5], vec[5:6], vec[6:7]
    g2, bn2, b_ff2 = vec[7:8], vec[8:9], vec[9:10]

    def mm(a, w_ref):
        # bf16 operands on the MXU, f32 accumulation
        return jnp.dot(a.astype(jnp.bfloat16), w_ref[...],
                       preferred_element_type=jnp.float32)

    # patch embedding (Linear) + positional encoding (broadcast add, no tile)
    x = mm(x2, we_ref) + b_emb                           # (Bt*S, D) f32
    x = (x.reshape(Bt, S, D) + pos_ref[...]).reshape(Bt * S, D)
    # TODO(synk): transformer.dropout treated as identity (eval mode / p=0).

    # ---- stand-in transformer: one pre-LN encoder layer, single attention head
    h = _layernorm(x, g1, bn1)
    qkv = mm(h, wqkv_ref)                                # fused QKV, (Bt*S, 3D)
    # 1/sqrt(D) scale is folded into wq / bq in the weight pack (glue).
    q = (qkv[:, 0:D]         + bq).reshape(Bt, S, D).astype(jnp.bfloat16)
    k = (qkv[:, D:2 * D]     + bk).reshape(Bt, S, D).astype(jnp.bfloat16)
    v = (qkv[:, 2 * D:3 * D] + bv).reshape(Bt, S, D).astype(jnp.bfloat16)

    # attention stays batched per image (no cross-image mixing)
    # TODO(synk): for large S (>=512) tile over q-blocks (flash-style) instead
    # of materializing the full (Bt, S, S) scores tensor.
    scores = jnp.einsum('bqd,bkd->bqk', q, k,
                        preferred_element_type=jnp.float32)
    scores = scores - jnp.max(scores, axis=-1, keepdims=True)
    p = jnp.exp(scores.astype(jnp.bfloat16))             # bf16 EUP on v6e/v7x
    l = jnp.sum(p.astype(jnp.float32), axis=-1, keepdims=True)   # f32 row sum
    attn = jnp.einsum('bqk,bkd->bqd', p, v,
                      preferred_element_type=jnp.float32)
    # normalize after PV matmul (D-wide multiply instead of S-wide)
    attn = (attn * pl.reciprocal(l, approx=True)).astype(jnp.bfloat16)
    x = x + mm(attn.reshape(Bt * S, D), wo_ref) + bo

    h2 = _layernorm(x, g2, bn2)
    ff = mm(h2, w1_ref) + b1_ref[...]
    # TODO(synk): tanh-approx GELU; exact-erf GELU differs slightly from nn.GELU.
    ff = jax.nn.gelu(ff.astype(jnp.bfloat16), approximate=True)
    x = x + mm(ff, w2_ref) + b_ff2

    # to_bits head — output padded to 128 lanes for a lane-dense (unmasked) store
    logits = mm(x, wbits_ref) + bbits_ref[...]           # (Bt*S, C_pad)
    out_ref[...] = logits.reshape(Bt, S, -1).astype(out_ref.dtype)


# -----------------------------------------------------------------------------
# Parameter packing (hoisted out of the hot path — cache per parameter update)
# -----------------------------------------------------------------------------
def pack_mpp_params(params):
    D = params["w_embed"].shape[1]
    C = params["w_bits"].shape[1]
    C_pad = -(-C // 128) * 128
    scale = 1.0 / math.sqrt(D)
    bf16 = lambda a: a.astype(jnp.bfloat16)

    # pack the 10 small per-feature vectors into a single (10, D) f32 input;
    # fold the 1/sqrt(D) attention scale into bq (and into wq below)
    vec_pack = jnp.concatenate(
        [params["b_embed"], params["ln1_g"], params["ln1_b"],
         params["bq"] * scale, params["bk"], params["bv"], params["bo"],
         params["ln2_g"], params["ln2_b"], params["b2"]],
        axis=0).astype(jnp.float32)
    wqkv = bf16(jnp.concatenate(
        [params["wq"] * scale, params["wk"], params["wv"]], axis=1))
    # pad to_bits head to 128 output lanes (padded columns are zero, sliced away)
    w_bits = jnp.zeros((D, C_pad), jnp.float32).at[:, :C].set(params["w_bits"])
    b_bits = jnp.zeros((1, C_pad), jnp.float32).at[:, :C].set(params["b_bits"])

    return dict(
        token=bf16(params["mask_token"].reshape(1, -1)),
        w_embed=bf16(params["w_embed"]),
        pos=params["pos"].astype(jnp.float32),
        vec=vec_pack,
        wqkv=wqkv,
        wo=bf16(params["wo"]),
        w1=bf16(params["w1"]),
        b1=params["b1"].astype(jnp.float32),
        w2=bf16(params["w2"]),
        w_bits=bf16(w_bits),
        b_bits=b_bits,
        dim=D,
        num_classes=C,
    )


# -----------------------------------------------------------------------------
# pallas_call wrapper
# -----------------------------------------------------------------------------
def _pick_vmem_limit():
    cap = 128 << 20
    try:
        info = pltpu.get_tpu_info()
        cap = int(getattr(info, "vmem_capacity_bytes", cap))
    except Exception:
        pass
    # ~100 MiB on v5e/v6e (128 MiB physical), ~54 MiB on v7x (64 MiB physical)
    return int(min(100 << 20, int(cap * 0.85)))


def _choose_batch_tile(B, S, P, D, mlp_dim, C_pad, act_budget_bytes):
    """Largest divisor of B that fits the activation budget and keeps >= 2 grid steps."""
    per_img = S * (2 * 2 * P          # bf16 patch tile, double buffered
                   + 2 * 2 * C_pad    # bf16 logits tile, double buffered
                   + 4 * 4 * D        # f32 residual / LN activations
                   + 4 * 3 * D        # f32 qkv (pre-cast)
                   + 2 * 3 * D        # bf16 q, k, v
                   + 4 * mlp_dim      # f32 ff (pre-cast)
                   + 2 * mlp_dim      # bf16 ff
                   + 4 * S)           # f32 scores
    bt_cap = max(1, int(act_budget_bytes) // max(1, per_img))
    best = 1
    for d in range(1, B + 1):
        if B % d == 0 and d <= bt_cap and (B // d) >= 2:
            best = d
    return best


def _const_spec(arr):
    """Full-array BlockSpec for grid-invariant weights; single-buffered."""
    nd = arr.ndim
    idx = lambda b, _nd=nd: (0,) * _nd
    try:
        return pl.BlockSpec(arr.shape, idx, pipeline_mode=pl.Buffered(1))
    except (TypeError, AttributeError):
        return pl.BlockSpec(arr.shape, idx)


def mpp_forward_logits(patches, mask, packed, *, batch_tile=None):
    """patches: (B, S, P) f32, mask: (B, S) bool -> logits (B, S, num_classes) f32."""
    B, S, P = patches.shape
    D = packed["dim"]
    C = packed["num_classes"]
    C_pad = packed["w_bits"].shape[1]
    mlp_dim = packed["w1"].shape[1]

    patches_bf = patches.astype(jnp.bfloat16)        # halve the streamed bytes
    maskc = mask.astype(jnp.float32)[..., None]      # (B, S, 1)

    const_keys = ("token", "w_embed", "pos", "vec", "wqkv", "wo",
                  "w1", "b1", "w2", "w_bits", "b_bits")
    const_inputs = [packed[k] for k in const_keys]
    weight_bytes = sum(int(a.size) * a.dtype.itemsize for a in const_inputs)

    vmem_limit = _pick_vmem_limit()
    if batch_tile is None:
        act_budget = max(vmem_limit - 2 * weight_bytes, vmem_limit // 4)
        Bt = _choose_batch_tile(B, S, P, D, mlp_dim, C_pad, act_budget)
    else:
        Bt = min(batch_tile, B)
    assert B % Bt == 0, "batch must be divisible by the batch tile"
    grid = (B // Bt,)

    inputs = [patches_bf, maskc] + const_inputs

    def batched(arr):
        nd = arr.ndim
        return pl.BlockSpec((Bt,) + tuple(arr.shape[1:]),
                            lambda b, _nd=nd: (b,) + (0,) * (_nd - 1))

    in_specs = ([batched(patches_bf), batched(maskc)]
                + [_const_spec(a) for a in const_inputs])

    out = pl.pallas_call(
        mpp_kernel,
        out_shape=jax.ShapeDtypeStruct((B, S, C_pad), jnp.bfloat16),
        grid_spec=pltpu.PrefetchScalarGridSpec(
            num_scalar_prefetch=0,
            grid=grid,
            in_specs=in_specs,
            out_specs=pl.BlockSpec((Bt, S, C_pad), lambda b: (b, 0, 0)),
        ),
        compiler_params=pltpu.CompilerParams(
            dimension_semantics=("parallel",),
            vmem_limit_bytes=vmem_limit),
    )(*inputs)
    return out[:, :, :C].astype(jnp.float32)


# -----------------------------------------------------------------------------
# JAX glue: patchify, mask generation, parameters, MPP loss
# -----------------------------------------------------------------------------
def patchify(img, p1, p2):
    # 'b c (h p1) (w p2) -> b (h w) (p1 p2 c)'
    B, C, H, W = img.shape
    h, w = H // p1, W // p2
    x = img.reshape(B, C, h, p1, w, p2)
    x = jnp.transpose(x, (0, 2, 4, 3, 5, 1))        # b h w p1 p2 c
    return x.reshape(B, h * w, p1 * p2 * C)


def prefix_mask(key, batch, seq_len):
    # mirrors get_mask_subset_with_prob: random prefix of length rand+1, rand in [1, S-1]
    # TODO(synk): torch RNG semantics differ; distribution kept, exact draws won't match.
    rand = jax.random.randint(key, (batch,), 1, seq_len)
    return jnp.arange(seq_len)[None, :] <= rand[:, None]


def sinusoidal_pe(S, D):
    pos = jnp.arange(S, dtype=jnp.float32)[:, None]
    i = jnp.arange(D, dtype=jnp.float32)[None, :]
    angle = pos / jnp.power(10000.0, (2.0 * jnp.floor(i / 2.0)) / D)
    return jnp.where((jnp.arange(D)[None, :] % 2) == 0,
                     jnp.sin(angle), jnp.cos(angle)).astype(jnp.float32)


def init_params(key, patch_dim, dim, mlp_dim, num_classes, seq_len):
    keys = jax.random.split(key, 9)
    s = 0.02

    def rn(k, shape):
        return (jax.random.normal(k, shape) * s).astype(jnp.float32)

    return dict(
        mask_token=jax.random.normal(keys[0], (1, 1, patch_dim), jnp.float32),
        w_embed=rn(keys[1], (patch_dim, dim)),
        b_embed=jnp.zeros((1, dim), jnp.float32),
        pos=sinusoidal_pe(seq_len, dim),
        ln1_g=jnp.ones((1, dim), jnp.float32),
        ln1_b=jnp.zeros((1, dim), jnp.float32),
        wq=rn(keys[2], (dim, dim)), wk=rn(keys[3], (dim, dim)), wv=rn(keys[4], (dim, dim)),
        bq=jnp.zeros((1, dim), jnp.float32),
        bk=jnp.zeros((1, dim), jnp.float32),
        bv=jnp.zeros((1, dim), jnp.float32),
        wo=rn(keys[5], (dim, dim)), bo=jnp.zeros((1, dim), jnp.float32),
        ln2_g=jnp.ones((1, dim), jnp.float32),
        ln2_b=jnp.zeros((1, dim), jnp.float32),
        w1=rn(keys[6], (dim, mlp_dim)), b1=jnp.zeros((1, mlp_dim), jnp.float32),
        w2=rn(keys[7], (mlp_dim, dim)), b2=jnp.zeros((1, dim), jnp.float32),
        w_bits=rn(keys[8], (dim, num_classes)),
        b_bits=jnp.zeros((1, num_classes), jnp.float32),
    )


def mpp_loss(logits, img, mask, patch_size, channels, bits, mpv):
    """MPPLoss.forward (mean/std = None)."""
    p1, p2 = patch_size
    B, C, H, W = img.shape
    target = jnp.minimum(img, mpv)                            # clamp(max=mpv)
    h, w = H // p1, W // p2
    t = target.reshape(B, C, h, p1, w, p2)
    avg_target = t.mean(axis=(3, 5))                          # (B, C, h, w)
    avg_target = avg_target.reshape(B, C, h * w).transpose(0, 2, 1)   # b (h w) c

    bin_size = mpv / (2 ** bits)
    channel_bins = jnp.arange(bin_size, mpv, bin_size, dtype=jnp.float32)
    disc = jnp.searchsorted(channel_bins, avg_target, side="left")     # torch.bucketize(right=False)
    bin_mask = (2 ** bits) ** jnp.arange(channels)
    target_label = jnp.sum(bin_mask[None, None, :] * disc, axis=-1)    # (B, S)

    logp = jax.nn.log_softmax(logits, axis=-1)
    ce = -jnp.take_along_axis(logp, target_label[..., None], axis=-1)[..., 0]
    maskf = mask.astype(jnp.float32)
    return jnp.sum(ce * maskf) / jnp.sum(maskf)                # == mean over masked patches


def mpp_forward(img, key_mask, params, patch_size, channels, bits, mpv):
    p1, p2 = patch_size
    B = img.shape[0]
    S = (img.shape[2] // p1) * (img.shape[3] // p2)
    patches = patchify(img, p1, p2)
    mask = prefix_mask(key_mask, B, S)
    # NOTE: in a training loop, cache `packed` across steps (recompute only on
    # parameter updates) to avoid rewriting all weights to HBM every forward.
    packed = pack_mpp_params(params)
    logits = mpp_forward_logits(patches, mask, packed)
    return mpp_loss(logits, img, mask, patch_size, channels, bits, mpv)


# -----------------------------------------------------------------------------
if __name__ == "__main__":
    # small shapes consistent with the module defaults (channels=1, bits=1)
    B, C_img, H, W = 2, 1, 16, 16
    p1 = p2 = 4
    dim = 32
    mlp_dim = 64
    bits = 1
    mpv = 1.0
    num_classes = 2 ** (bits * C_img)            # to_bits: Linear(dim, 2**(bits*channels))
    patch_dim = C_img * p1 * p2                  # mask_token: (1, 1, c*p1*p2)
    S = (H // p1) * (W // p2)

    key = jax.random.PRNGKey(0)
    k_img, k_mask, k_par = jax.random.split(key, 3)

    img = jax.random.uniform(k_img, (B, C_img, H, W), jnp.float32)
    params = init_params(k_par, patch_dim, dim, mlp_dim, num_classes, S)

    loss = mpp_forward(img, k_mask, params, (p1, p2), C_img, bits, mpv)
    loss = jax.block_until_ready(loss)
    assert bool(jnp.isfinite(loss))
    print("KERNEL_OK")
</pallas_src>

<mosaic_0001>
module attributes {stable_mosaic.version = 11 : i64} {
  func.func @mpp_kernel(%arg0: i32, %arg1: memref<1x16x16xbf16, #tpu.memory_space<vmem>>, %arg2: memref<1x16x1xf32, #tpu.memory_space<vmem>>, %arg3: memref<1x16xbf16, #tpu.memory_space<vmem>>, %arg4: memref<16x32xbf16, #tpu.memory_space<vmem>>, %arg5: memref<16x32xf32, #tpu.memory_space<vmem>>, %arg6: memref<10x32xf32, #tpu.memory_space<vmem>>, %arg7: memref<32x96xbf16, #tpu.memory_space<vmem>>, %arg8: memref<32x32xbf16, #tpu.memory_space<vmem>>, %arg9: memref<32x64xbf16, #tpu.memory_space<vmem>>, %arg10: memref<1x64xf32, #tpu.memory_space<vmem>>, %arg11: memref<64x32xbf16, #tpu.memory_space<vmem>>, %arg12: memref<32x128xbf16, #tpu.memory_space<vmem>>, %arg13: memref<1x128xf32, #tpu.memory_space<vmem>>, %arg14: memref<1x16x128xbf16, #tpu.memory_space<vmem>>) attributes {dimension_semantics = [#tpu.dimension_semantics<parallel>], iteration_bounds = array<i64: 2>, scalar_prefetch = 0 : i64, scratch_operands = 0 : i64, tpu.core_type = #tpu.core_type<tc>, window_params = [{transform_indices = @transform_0, window_bounds = array<i64: 1, 16, 16>}, {transform_indices = @transform_1, window_bounds = array<i64: 1, 16, 1>}, {pipeline_mode = #tpu.pipeline_mode<synchronous>, transform_indices = @transform_2, window_bounds = array<i64: 1, 16>}, {pipeline_mode = #tpu.pipeline_mode<synchronous>, transform_indices = @transform_3, window_bounds = array<i64: 16, 32>}, {pipeline_mode = #tpu.pipeline_mode<synchronous>, transform_indices = @transform_4, window_bounds = array<i64: 16, 32>}, {pipeline_mode = #tpu.pipeline_mode<synchronous>, transform_indices = @transform_5, window_bounds = array<i64: 10, 32>}, {pipeline_mode = #tpu.pipeline_mode<synchronous>, transform_indices = @transform_6, window_bounds = array<i64: 32, 96>}, {pipeline_mode = #tpu.pipeline_mode<synchronous>, transform_indices = @transform_7, window_bounds = array<i64: 32, 32>}, {pipeline_mode = #tpu.pipeline_mode<synchronous>, transform_indices = @transform_8, window_bounds = array<i64: 32, 64>}, {pipeline_mode = #tpu.pipeline_mode<synchronous>, transform_indices = @transform_9, window_bounds = array<i64: 1, 64>}, {pipeline_mode = #tpu.pipeline_mode<synchronous>, transform_indices = @transform_10, window_bounds = array<i64: 64, 32>}, {pipeline_mode = #tpu.pipeline_mode<synchronous>, transform_indices = @transform_11, window_bounds = array<i64: 32, 128>}, {pipeline_mode = #tpu.pipeline_mode<synchronous>, transform_indices = @transform_12, window_bounds = array<i64: 1, 128>}, {transform_indices = @transform_13, window_bounds = array<i64: 1, 16, 128>}]} {
    %c0 = arith.constant 0 : index
    %c0_0 = arith.constant 0 : index
    %c0_1 = arith.constant 0 : index
    %0 = vector.load %arg1[%c0, %c0_0, %c0_1] : memref<1x16x16xbf16, #tpu.memory_space<vmem>>, vector<1x16x16xbf16>
    %c0_2 = arith.constant 0 : index
    %c0_3 = arith.constant 0 : index
    %c0_4 = arith.constant 0 : index
    %1 = vector.load %arg2[%c0_2, %c0_3, %c0_4] : memref<1x16x1xf32, #tpu.memory_space<vmem>>, vector<1x16x1xf32>
    %c0_5 = arith.constant 0 : index
    %c0_6 = arith.constant 0 : index
    %2 = vector.load %arg3[%c0_5, %c0_6] : memref<1x16xbf16, #tpu.memory_space<vmem>>, vector<1x16xbf16>
    %cst = arith.constant 0.000000e+00 : f32
    %3 = vector.broadcast %cst : f32 to vector<1x16x1xf32>
    %4 = arith.cmpf ogt, %1, %3 : vector<1x16x1xf32>
    %5 = vector.shape_cast %4 : vector<1x16x1xi1> to vector<1x16x1xi1>
    %6 = vector.broadcast %5 : vector<1x16x1xi1> to vector<1x16x16xi1>
    %7 = vector.shape_cast %2 : vector<1x16xbf16> to vector<1x1x16xbf16>
    %8 = vector.broadcast %7 : vector<1x1x16xbf16> to vector<1x16x16xbf16>
    %9 = arith.select %6, %8, %0 : vector<1x16x16xi1>, vector<1x16x16xbf16>
    %10 = vector.shape_cast %9 : vector<1x16x16xbf16> to vector<16x16xbf16>
    %c0_7 = arith.constant 0 : index
    %c0_8 = arith.constant 0 : index
    %11 = vector.load %arg6[%c0_7, %c0_8] : memref<10x32xf32, #tpu.memory_space<vmem>>, vector<10x32xf32>
    %12 = vector.extract_strided_slice %11 {offsets = [0, 0], sizes = [1, 32], strides = [1, 1]} : vector<10x32xf32> to vector<1x32xf32>
    %13 = vector.extract_strided_slice %11 {offsets = [1, 0], sizes = [1, 32], strides = [1, 1]} : vector<10x32xf32> to vector<1x32xf32>
    %14 = vector.extract_strided_slice %11 {offsets = [2, 0], sizes = [1, 32], strides = [1, 1]} : vector<10x32xf32> to vector<1x32xf32>
    %15 = vector.extract_strided_slice %11 {offsets = [3, 0], sizes = [1, 32], strides = [1, 1]} : vector<10x32xf32> to vector<1x32xf32>
    %16 = vector.extract_strided_slice %11 {offsets = [4, 0], sizes = [1, 32], strides = [1, 1]} : vector<10x32xf32> to vector<1x32xf32>
    %17 = vector.extract_strided_slice %11 {offsets = [5, 0], sizes = [1, 32], strides = [1, 1]} : vector<10x32xf32> to vector<1x32xf32>
    %18 = vector.extract_strided_slice %11 {offsets = [6, 0], sizes = [1, 32], strides = [1, 1]} : vector<10x32xf32> to vector<1x32xf32>
    %19 = vector.extract_strided_slice %11 {offsets = [7, 0], sizes = [1, 32], strides = [1, 1]} : vector<10x32xf32> to vector<1x32xf32>
    %20 = vector.extract_strided_slice %11 {offsets = [8, 0], sizes = [1, 32], strides = [1, 1]} : vector<10x32xf32> to vector<1x32xf32>
    %21 = vector.extract_strided_slice %11 {offsets = [9, 0], sizes = [1, 32], strides = [1, 1]} : vector<10x32xf32> to vector<1x32xf32>
    %c0_9 = arith.constant 0 : index
    %c0_10 = arith.constant 0 : index
    %22 = vector.load %arg4[%c0_9, %c0_10] : memref<16x32xbf16, #tpu.memory_space<vmem>>, vector<16x32xbf16>
    %cst_11 = arith.constant dense<0.000000e+00> : vector<16x32xf32>
    %23 = tpu.matmul %10, %22, %cst_11 {dimension_numbers = #tpu.dot_dimension_numbers<[1], [0], [0], [1], [0, 0, 1, 1], [], []>} : vector<16x16xbf16>, vector<16x32xbf16>, vector<16x32xf32> -> vector<16x32xf32>
    %24 = vector.broadcast %12 : vector<1x32xf32> to vector<16x32xf32>
    %25 = arith.addf %23, %24 : vector<16x32xf32>
    %26 = vector.shape_cast %25 : vector<16x32xf32> to vector<1x16x32xf32>
    %c0_12 = arith.constant 0 : index
    %c0_13 = arith.constant 0 : index
    %27 = vector.load %arg5[%c0_12, %c0_13] : memref<16x32xf32, #tpu.memory_space<vmem>>, vector<16x32xf32>
    %28 = vector.shape_cast %27 : vector<16x32xf32> to vector<1x16x32xf32>
    %29 = arith.addf %26, %28 : vector<1x16x32xf32>
    %30 = vector.shape_cast %29 : vector<1x16x32xf32> to vector<16x32xf32>
    %cst_14 = arith.constant dense<0.000000e+00> : vector<16xf32>
    %31 = vector.multi_reduction <add>, %30, %cst_14 [1] : vector<16x32xf32> to vector<16xf32>
    %32 = vector.shape_cast %31 : vector<16xf32> to vector<16x1xf32>
    %cst_15 = arith.constant 3.200000e+01 : f32
    %33 = vector.broadcast %cst_15 : f32 to vector<16x1xf32>
    %34 = arith.divf %32, %33 : vector<16x1xf32>
    %35 = vector.broadcast %34 : vector<16x1xf32> to vector<16x32xf32>
    %36 = arith.subf %30, %35 : vector<16x32xf32>
    %37 = arith.mulf %36, %36 : vector<16x32xf32>
    %cst_16 = arith.constant dense<0.000000e+00> : vector<16xf32>
    %38 = vector.multi_reduction <add>, %37, %cst_16 [1] : vector<16x32xf32> to vector<16xf32>
    %39 = vector.shape_cast %38 : vector<16xf32> to vector<16x1xf32>
    %cst_17 = arith.constant 3.200000e+01 : f32
    %40 = vector.broadcast %cst_17 : f32 to vector<16x1xf32>
    %41 = arith.divf %39, %40 : vector<16x1xf32>
    %42 = vector.broadcast %34 : vector<16x1xf32> to vector<16x32xf32>
    %43 = arith.subf %30, %42 : vector<16x32xf32>
    %cst_18 = arith.constant 9.99999974E-6 : f32
    %44 = vector.broadcast %cst_18 : f32 to vector<16x1xf32>
    %45 = arith.addf %41, %44 : vector<16x1xf32>
    %46 = math.rsqrt %45 : vector<16x1xf32>
    %47 = vector.broadcast %46 : vector<16x1xf32> to vector<16x32xf32>
    %48 = arith.mulf %43, %47 : vector<16x32xf32>
    %49 = vector.broadcast %13 : vector<1x32xf32> to vector<16x32xf32>
    %50 = arith.mulf %48, %49 : vector<16x32xf32>
    %51 = vector.broadcast %14 : vector<1x32xf32> to vector<16x32xf32>
    %52 = arith.addf %50, %51 : vector<16x32xf32>
    %53 = arith.truncf %52 : vector<16x32xf32> to vector<16x32xbf16>
    %c0_19 = arith.constant 0 : index
    %c0_20 = arith.constant 0 : index
    %54 = vector.load %arg7[%c0_19, %c0_20] : memref<32x96xbf16, #tpu.memory_space<vmem>>, vector<32x96xbf16>
    %cst_21 = arith.constant dense<0.000000e+00> : vector<16x96xf32>
    %55 = tpu.matmul %53, %54, %cst_21 {dimension_numbers = #tpu.dot_dimension_numbers<[1], [0], [0], [1], [0, 0, 1, 1], [], []>} : vector<16x32xbf16>, vector<32x96xbf16>, vector<16x96xf32> -> vector<16x96xf32>
    %56 = vector.extract_strided_slice %55 {offsets = [0, 0], sizes = [16, 32], strides = [1, 1]} : vector<16x96xf32> to vector<16x32xf32>
    %57 = vector.broadcast %15 : vector<1x32xf32> to vector<16x32xf32>
    %58 = arith.addf %56, %57 : vector<16x32xf32>
    %59 = vector.shape_cast %58 : vector<16x32xf32> to vector<1x16x32xf32>
    %60 = arith.truncf %59 : vector<1x16x32xf32> to vector<1x16x32xbf16>
    %61 = vector.extract_strided_slice %55 {offsets = [0, 32], sizes = [16, 32], strides = [1, 1]} : vector<16x96xf32> to vector<16x32xf32>
    %62 = vector.broadcast %16 : vector<1x32xf32> to vector<16x32xf32>
    %63 = arith.addf %61, %62 : vector<16x32xf32>
    %64 = vector.shape_cast %63 : vector<16x32xf32> to vector<1x16x32xf32>
    %65 = arith.truncf %64 : vector<1x16x32xf32> to vector<1x16x32xbf16>
    %66 = vector.extract_strided_slice %55 {offsets = [0, 64], sizes = [16, 32], strides = [1, 1]} : vector<16x96xf32> to vector<16x32xf32>
    %67 = vector.broadcast %17 : vector<1x32xf32> to vector<16x32xf32>
    %68 = arith.addf %66, %67 : vector<16x32xf32>
    %69 = vector.shape_cast %68 : vector<16x32xf32> to vector<1x16x32xf32>
    %70 = arith.truncf %69 : vector<1x16x32xf32> to vector<1x16x32xbf16>
    "tpu.trace_start"() <{level = 10 : i32, message = "bqd,bkd->bqk"}> : () -> ()
    %cst_22 = arith.constant dense<0.000000e+00> : vector<1x16x16xf32>
    %71 = tpu.matmul %60, %65, %cst_22 {dimension_numbers = #tpu.dot_dimension_numbers<[2], [2], [1], [1], [0, 0, 0, 1, 1, 1], [0], [0]>} : vector<1x16x32xbf16>, vector<1x16x32xbf16>, vector<1x16x16xf32> -> vector<1x16x16xf32>
    "tpu.trace_stop"() : () -> ()
    %cst_23 = arith.constant dense<0xFF800000> : vector<1x16xf32>
    %72 = vector.multi_reduction <maximumf>, %71, %cst_23 [2] : vector<1x16x16xf32> to vector<1x16xf32>
    %73 = vector.shape_cast %72 : vector<1x16xf32> to vector<1x16x1xf32>
    %74 = vector.broadcast %73 : vector<1x16x1xf32> to vector<1x16x16xf32>
    %75 = arith.subf %71, %74 : vector<1x16x16xf32>
    %76 = arith.truncf %75 : vector<1x16x16xf32> to vector<1x16x16xbf16>
    %77 = math.exp %76 : vector<1x16x16xbf16>
    %78 = arith.extf %77 : vector<1x16x16xbf16> to vector<1x16x16xf32>
    %cst_24 = arith.constant dense<0.000000e+00> : vector<1x16xf32>
    %79 = vector.multi_reduction <add>, %78, %cst_24 [2] : vector<1x16x16xf32> to vector<1x16xf32>
    %80 = vector.shape_cast %79 : vector<1x16xf32> to vector<1x16x1xf32>
    "tpu.trace_start"() <{level = 10 : i32, message = "bqk,bkd->bqd"}> : () -> ()
    %cst_25 = arith.constant dense<0.000000e+00> : vector<1x16x32xf32>
    %81 = tpu.matmul %77, %70, %cst_25 {dimension_numbers = #tpu.dot_dimension_numbers<[2], [1], [1], [2], [0, 0, 0, 1, 1, 2], [0], [0]>} : vector<1x16x16xbf16>, vector<1x16x32xbf16>, vector<1x16x32xf32> -> vector<1x16x32xf32>
    "tpu.trace_stop"() : () -> ()
    %82 = tpu.reciprocal %80 {approx = true} : vector<1x16x1xf32> -> vector<1x16x1xf32>
    %83 = vector.broadcast %82 : vector<1x16x1xf32> to vector<1x16x32xf32>
    %84 = arith.mulf %81, %83 : vector<1x16x32xf32>
    %85 = arith.truncf %84 : vector<1x16x32xf32> to vector<1x16x32xbf16>
    %86 = vector.shape_cast %85 : vector<1x16x32xbf16> to vector<16x32xbf16>
    %c0_26 = arith.constant 0 : index
    %c0_27 = arith.constant 0 : index
    %87 = vector.load %arg8[%c0_26, %c0_27] : memref<32x32xbf16, #tpu.memory_space<vmem>>, vector<32x32xbf16>
    %cst_28 = arith.constant dense<0.000000e+00> : vector<16x32xf32>
    %88 = tpu.matmul %86, %87, %cst_28 {dimension_numbers = #tpu.dot_dimension_numbers<[1], [0], [0], [1], [0, 0, 1, 1], [], []>} : vector<16x32xbf16>, vector<32x32xbf16>, vector<16x32xf32> -> vector<16x32xf32>
    %89 = arith.addf %30, %88 : vector<16x32xf32>
    %90 = vector.broadcast %18 : vector<1x32xf32> to vector<16x32xf32>
    %91 = arith.addf %89, %90 : vector<16x32xf32>
    %cst_29 = arith.constant dense<0.000000e+00> : vector<16xf32>
    %92 = vector.multi_reduction <add>, %91, %cst_29 [1] : vector<16x32xf32> to vector<16xf32>
    %93 = vector.shape_cast %92 : vector<16xf32> to vector<16x1xf32>
    %cst_30 = arith.constant 3.200000e+01 : f32
    %94 = vector.broadcast %cst_30 : f32 to vector<16x1xf32>
    %95 = arith.divf %93, %94 : vector<16x1xf32>
    %96 = vector.broadcast %95 : vector<16x1xf32> to vector<16x32xf32>
    %97 = arith.subf %91, %96 : vector<16x32xf32>
    %98 = arith.mulf %97, %97 : vector<16x32xf32>
    %cst_31 = arith.constant dense<0.000000e+00> : vector<16xf32>
    %99 = vector.multi_reduction <add>, %98, %cst_31 [1] : vector<16x32xf32> to vector<16xf32>
    %100 = vector.shape_cast %99 : vector<16xf32> to vector<16x1xf32>
    %cst_32 = arith.constant 3.200000e+01 : f32
    %101 = vector.broadcast %cst_32 : f32 to vector<16x1xf32>
    %102 = arith.divf %100, %101 : vector<16x1xf32>
    %103 = vector.broadcast %95 : vector<16x1xf32> to vector<16x32xf32>
    %104 = arith.subf %91, %103 : vector<16x32xf32>
    %cst_33 = arith.constant 9.99999974E-6 : f32
    %105 = vector.broadcast %cst_33 : f32 to vector<16x1xf32>
    %106 = arith.addf %102, %105 : vector<16x1xf32>
    %107 = math.rsqrt %106 : vector<16x1xf32>
    %108 = vector.broadcast %107 : vector<16x1xf32> to vector<16x32xf32>
    %109 = arith.mulf %104, %108 : vector<16x32xf32>
    %110 = vector.broadcast %19 : vector<1x32xf32> to vector<16x32xf32>
    %111 = arith.mulf %109, %110 : vector<16x32xf32>
    %112 = vector.broadcast %20 : vector<1x32xf32> to vector<16x32xf32>
    %113 = arith.addf %111, %112 : vector<16x32xf32>
    %114 = arith.truncf %113 : vector<16x32xf32> to vector<16x32xbf16>
    %c0_34 = arith.constant 0 : index
    %c0_35 = arith.constant 0 : index
    %115 = vector.load %arg9[%c0_34, %c0_35] : memref<32x64xbf16, #tpu.memory_space<vmem>>, vector<32x64xbf16>
    %cst_36 = arith.constant dense<0.000000e+00> : vector<16x64xf32>
    %116 = tpu.matmul %114, %115, %cst_36 {dimension_numbers = #tpu.dot_dimension_numbers<[1], [0], [0], [1], [0, 0, 1, 1], [], []>} : vector<16x32xbf16>, vector<32x64xbf16>, vector<16x64xf32> -> vector<16x64xf32>
    %c0_37 = arith.constant 0 : index
    %c0_38 = arith.constant 0 : index
    %117 = vector.load %arg10[%c0_37, %c0_38] : memref<1x64xf32, #tpu.memory_space<vmem>>, vector<1x64xf32>
    %118 = vector.broadcast %117 : vector<1x64xf32> to vector<16x64xf32>
    %119 = arith.addf %116, %118 : vector<16x64xf32>
    %120 = arith.truncf %119 : vector<16x64xf32> to vector<16x64xbf16>
    %121 = arith.mulf %120, %120 : vector<16x64xbf16>
    %122 = arith.mulf %120, %121 : vector<16x64xbf16>
    %cst_39 = arith.constant 4.467770e-02 : bf16
    %123 = vector.broadcast %cst_39 : bf16 to vector<16x64xbf16>
    %124 = arith.mulf %123, %122 : vector<16x64xbf16>
    %125 = arith.addf %120, %124 : vector<16x64xbf16>
    %cst_40 = arith.constant 7.968750e-01 : bf16
    %126 = vector.broadcast %cst_40 : bf16 to vector<16x64xbf16>
    %127 = arith.mulf %126, %125 : vector<16x64xbf16>
    %128 = math.tanh %127 : vector<16x64xbf16>
    %cst_41 = arith.constant 1.000000e+00 : bf16
    %129 = vector.broadcast %cst_41 : bf16 to vector<16x64xbf16>
    %130 = arith.addf %129, %128 : vector<16x64xbf16>
    %cst_42 = arith.constant 5.000000e-01 : bf16
    %131 = vector.broadcast %cst_42 : bf16 to vector<16x64xbf16>
    %132 = arith.mulf %131, %130 : vector<16x64xbf16>
    %133 = arith.mulf %120, %132 : vector<16x64xbf16>
    %c0_43 = arith.constant 0 : index
    %c0_44 = arith.constant 0 : index
    %134 = vector.load %arg11[%c0_43, %c0_44] : memref<64x32xbf16, #tpu.memory_space<vmem>>, vector<64x32xbf16>
    %cst_45 = arith.constant dense<0.000000e+00> : vector<16x32xf32>
    %135 = tpu.matmul %133, %134, %cst_45 {dimension_numbers = #tpu.dot_dimension_numbers<[1], [0], [0], [1], [0, 0, 1, 1], [], []>} : vector<16x64xbf16>, vector<64x32xbf16>, vector<16x32xf32> -> vector<16x32xf32>
    %136 = arith.addf %91, %135 : vector<16x32xf32>
    %137 = vector.broadcast %21 : vector<1x32xf32> to vector<16x32xf32>
    %138 = arith.addf %136, %137 : vector<16x32xf32>
    %139 = arith.truncf %138 : vector<16x32xf32> to vector<16x32xbf16>
    %c0_46 = arith.constant 0 : index
    %c0_47 = arith.constant 0 : index
    %140 = vector.load %arg12[%c0_46, %c0_47] : memref<32x128xbf16, #tpu.memory_space<vmem>>, vector<32x128xbf16>
    %cst_48 = arith.constant dense<0.000000e+00> : vector<16x128xf32>
    %141 = tpu.matmul %139, %140, %cst_48 {dimension_numbers = #tpu.dot_dimension_numbers<[1], [0], [0], [1], [0, 0, 1, 1], [], []>} : vector<16x32xbf16>, vector<32x128xbf16>, vector<16x128xf32> -> vector<16x128xf32>
    %c0_49 = arith.constant 0 : index
    %c0_50 = arith.constant 0 : index
    %142 = vector.load %arg13[%c0_49, %c0_50] : memref<1x128xf32, #tpu.memory_space<vmem>>, vector<1x128xf32>
    %143 = vector.broadcast %142 : vector<1x128xf32> to vector<16x128xf32>
    %144 = arith.addf %141, %143 : vector<16x128xf32>
    %145 = vector.shape_cast %144 : vector<16x128xf32> to vector<1x16x128xf32>
    %146 = arith.truncf %145 : vector<1x16x128xf32> to vector<1x16x128xbf16>
    %c0_51 = arith.constant 0 : index
    %c0_52 = arith.constant 0 : index
    %c0_53 = arith.constant 0 : index
    %147 = vector.load %arg14[%c0_51, %c0_52, %c0_53] : memref<1x16x128xbf16, #tpu.memory_space<vmem>>, vector<1x16x128xbf16>
    tpu.vector_store %arg14[%c0_51, %c0_52, %c0_53], %146 {strides = array<i32>} : memref<1x16x128xbf16, #tpu.memory_space<vmem>>, vector<1x16x128xbf16>,
    return
  }
  func.func @transform_0(%arg0: i32) -> (i32, i32, i32) {
    %c0_i32 = arith.constant 0 : i32
    %c0_i32_0 = arith.constant 0 : i32
    %c0_i32_1 = arith.constant 0 : i32
    return %arg0, %c0_i32, %c0_i32_0 : i32, i32, i32
  }
  func.func @transform_1(%arg0: i32) -> (i32, i32, i32) {
    %c0_i32 = arith.constant 0 : i32
    %c0_i32_0 = arith.constant 0 : i32
    %c0_i32_1 = arith.constant 0 : i32
    return %arg0, %c0_i32, %c0_i32_0 : i32, i32, i32
  }
  func.func @transform_2(%arg0: i32) -> (i32, i32) {
    %c0_i32 = arith.constant 0 : i32
    %c0_i32_0 = arith.constant 0 : i32
    %c0_i32_1 = arith.constant 0 : i32
    return %c0_i32, %c0_i32_0 : i32, i32
  }
  func.func @transform_3(%arg0: i32) -> (i32, i32) {
    %c0_i32 = arith.constant 0 : i32
    %c0_i32_0 = arith.constant 0 : i32
    %c0_i32_1 = arith.constant 0 : i32
    return %c0_i32, %c0_i32_0 : i32, i32
  }
  func.func @transform_4(%arg0: i32) -> (i32, i32) {
    %c0_i32 = arith.constant 0 : i32
    %c0_i32_0 = arith.constant 0 : i32
    %c0_i32_1 = arith.constant 0 : i32
    return %c0_i32, %c0_i32_0 : i32, i32
  }
  func.func @transform_5(%arg0: i32) -> (i32, i32) {
    %c0_i32 = arith.constant 0 : i32
    %c0_i32_0 = arith.constant 0 : i32
    %c0_i32_1 = arith.constant 0 : i32
    return %c0_i32, %c0_i32_0 : i32, i32
  }
  func.func @transform_6(%arg0: i32) -> (i32, i32) {
    %c0_i32 = arith.constant 0 : i32
    %c0_i32_0 = arith.constant 0 : i32
    %c0_i32_1 = arith.constant 0 : i32
    return %c0_i32, %c0_i32_0 : i32, i32
  }
  func.func @transform_7(%arg0: i32) -> (i32, i32) {
    %c0_i32 = arith.constant 0 : i32
    %c0_i32_0 = arith.constant 0 : i32
    %c0_i32_1 = arith.constant 0 : i32
    return %c0_i32, %c0_i32_0 : i32, i32
  }
  func.func @transform_8(%arg0: i32) -> (i32, i32) {
    %c0_i32 = arith.constant 0 : i32
    %c0_i32_0 = arith.constant 0 : i32
    %c0_i32_1 = arith.constant 0 : i32
    return %c0_i32, %c0_i32_0 : i32, i32
  }
  func.func @transform_9(%arg0: i32) -> (i32, i32) {
    %c0_i32 = arith.constant 0 : i32
    %c0_i32_0 = arith.constant 0 : i32
    %c0_i32_1 = arith.constant 0 : i32
    return %c0_i32, %c0_i32_0 : i32, i32
  }
  func.func @transform_10(%arg0: i32) -> (i32, i32) {
    %c0_i32 = arith.constant 0 : i32
    %c0_i32_0 = arith.constant 0 : i32
    %c0_i32_1 = arith.constant 0 : i32
    return %c0_i32, %c0_i32_0 : i32, i32
  }
  func.func @transform_11(%arg0: i32) -> (i32, i32) {
    %c0_i32 = arith.constant 0 : i32
    %c0_i32_0 = arith.constant 0 : i32
    %c0_i32_1 = arith.constant 0 : i32
    return %c0_i32, %c0_i32_0 : i32, i32
  }
  func.func @transform_12(%arg0: i32) -> (i32, i32) {
    %c0_i32 = arith.constant 0 : i32
    %c0_i32_0 = arith.constant 0 : i32
    %c0_i32_1 = arith.constant 0 : i32
    return %c0_i32, %c0_i32_0 : i32, i32
  }
  func.func @transform_13(%arg0: i32) -> (i32, i32, i32) {
    %c0_i32 = arith.constant 0 : i32
    %c0_i32_0 = arith.constant 0 : i32
    %c0_i32_1 = arith.constant 0 : i32
    return %arg0, %c0_i32, %c0_i32_0 : i32, i32, i32
  }
}

</mosaic_0001>

<llo_original>
// kernel: tpu_custom_call.1
$region0: #{tpu_custom_call.1}
  #allocation0 [shape = 'u32[]', space=smem, size = 0x4, offset = 0x4, fixed_abs, tag = 'smem constant byte address 0x4 - core index']
  #allocation1 [shape = 'u32[144,128]{1,0:T(1,128)}', space=vmem, size = 0x12000, scoped, tag = 'internal scratch']
  %s0 = inlined_call_operand.hbm [shape: bf16[2,16,16], index: 0, kind: input, shape index: {}]
  %s1 = inlined_call_operand.hbm [shape: f32[2,16,1], index: 1, kind: input, shape index: {}]
  %s2 = inlined_call_operand.hbm [shape: bf16[1,16], index: 2, kind: input, shape index: {}]
  %s3 = inlined_call_operand.hbm [shape: bf16[16,32], index: 3, kind: input, shape index: {}]
  %s4 = inlined_call_operand.hbm [shape: f32[16,32], index: 4, kind: input, shape index: {}]
  %s5 = inlined_call_operand.hbm [shape: f32[10,32], index: 5, kind: input, shape index: {}]
  %s6 = inlined_call_operand.hbm [shape: bf16[32,96], index: 6, kind: input, shape index: {}]
  %s7 = inlined_call_operand.hbm [shape: bf16[32,32], index: 7, kind: input, shape index: {}]
  %s8 = inlined_call_operand.hbm [shape: bf16[32,64], index: 8, kind: input, shape index: {}]
  %s9 = inlined_call_operand.hbm [shape: f32[1,64], index: 9, kind: input, shape index: {}]
  %s10 = inlined_call_operand.hbm [shape: bf16[64,32], index: 10, kind: input, shape index: {}]
  %s11 = inlined_call_operand.hbm [shape: bf16[32,128], index: 11, kind: input, shape index: {}]
  %s12 = inlined_call_operand.hbm [shape: f32[1,128], index: 12, kind: input, shape index: {}]
  %s13 = inlined_call_operand.hbm [shape: bf16[2,16,128], index: 13, kind: output, shape index: {}]
  %s14 = sld [smem:[#allocation0]]
  $region137: #{tpu_custom_call.1} parent=0
    _
  %s16 = ssub.s32 1, %s14
  %s17 = scalar_select 0, %s16, %s14
  $region1: #{tpu_custom_call.1} parent=0
    #allocation2 [shape = 'u8[8192]{0}', space=vmem, size = 0x2000, scoped, tag = 'input window, operand 0']
    #allocation3 [shape = 's32[2]{0}', space=sflag, size = 0x8, scoped, tag = 'scoped memory for tpu_custom_call.1']
    #allocation4 [shape = 's32[2]{0}', space=sflag, size = 0x8, scoped, tag = 'scoped memory for tpu_custom_call.1']
    #allocation5 [shape = 'u8[16384]{0}', space=vmem, size = 0x4000, scoped, tag = 'input window, operand 1']
    #allocation6 [shape = 's32[2]{0}', space=sflag, size = 0x8, scoped, tag = 'scoped memory for tpu_custom_call.1']
    #allocation7 [shape = 'u8[512]{0}', space=vmem, size = 0x400, scoped, tag = 'input window, operand 2, single buffered']
    #allocation8 [shape = 'u8[4096]{0}', space=vmem, size = 0x1000, scoped, tag = 'input window, operand 3, single buffered']
    #allocation9 [shape = 's32[1]{0}', space=sflag, size = 0x4, scoped, tag = 'scoped memory for tpu_custom_call.1']
    #allocation10 [shape = 'u8[8192]{0}', space=vmem, size = 0x2000, scoped, tag = 'input window, operand 4, single buffered']
    #allocation11 [shape = 'u8[8192]{0}', space=vmem, size = 0x2000, scoped, tag = 'input window, operand 5, single buffered']
    #allocation12 [shape = 's32[1]{0}', space=sflag, size = 0x4, scoped, tag = 'scoped memory for tpu_custom_call.1']
    #allocation13 [shape = 'u8[8192]{0}', space=vmem, size = 0x2000, scoped, tag = 'input window, operand 6, single buffered']
    #allocation14 [shape = 'u8[8192]{0}', space=vmem, size = 0x2000, scoped, tag = 'input window, operand 7, single buffered']
    #allocation15 [shape = 's32[1]{0}', space=sflag, size = 0x4, scoped, tag = 'scoped memory for tpu_custom_call.1']
    #allocation16 [shape = 'u8[8192]{0}', space=vmem, size = 0x2000, scoped, tag = 'input window, operand 8, single buffered']
    #allocation17 [shape = 'u8[512]{0}', space=vmem, size = 0x400, scoped, tag = 'input window, operand 9, single buffered']
    #allocation18 [shape = 's32[1]{0}', space=sflag, size = 0x4, scoped, tag = 'scoped memory for tpu_custom_call.1']
    #allocation19 [shape = 'u8[16384]{0}', space=vmem, size = 0x4000, scoped, tag = 'input window, operand 10, single buffered']
    #allocation20 [shape = 'u8[8192]{0}', space=vmem, size = 0x2000, scoped, tag = 'input window, operand 11, single buffered']
    #allocation21 [shape = 's32[1]{0}', space=sflag, size = 0x4, scoped, tag = 'scoped memory for tpu_custom_call.1']
    #allocation22 [shape = 'u8[512]{0}', space=vmem, size = 0x400, scoped, tag = 'input window, operand 12, single buffered']
    #allocation23 [shape = 'u8[8192]{0}', space=vmem, size = 0x2000, scoped, tag = 'output window, operand 0']
    %18 = vsyncpa [#allocation3], 0
    %s19 = scalar_lea.sflag [#allocation3], 1
    %20 = vsyncpa %s19, 0
    %21 = vsyncpa [#allocation6], 0
    %s22 = scalar_lea.sflag [#allocation6], 1
    %23 = vsyncpa %s22, 0
    %24 = vsyncpa [#allocation9], 0
    %25 = vsyncpa [#allocation12], 0
    %26 = vsyncpa [#allocation15], 0
    %27 = vsyncpa [#allocation18], 0
    %28 = vsyncpa [#allocation21], 0
    %29 = vsyncpa [#allocation4], 0
    %s30 = scalar_lea.sflag [#allocation4], 1
    %31 = vsyncpa %s30, 0
    loop: start=0, step=1, limit=4
    $region2: #{tpu_custom_call.1} parent=1 // loop_pre_header
      _
    $region3: #{tpu_custom_call.1} parent=1 // loop_header
      %s33 = sphi 0, %s37
      %p34 = scmp.ge.s32.totalorder %s33, 4
      %s43 = sphi 0, %s45
      %s46 = sphi 0, %s43
      %s47 = sphi 0, %s46
      %s63 = sphi 0, %s47
      %s69 = sphi 0, %s71
      %s72 = sphi 0, %s69
      %s73 = sphi 0, %s72
      %s89 = sphi 0, %s73
      %s93 = sphi 0, %s93
      %s95 = sphi 0, %s93
      %s96 = sphi 0, %s95
      %s110 = sphi 0, %s96
      %s114 = sphi 0, %s114
      %s116 = sphi 0, %s114
      %s117 = sphi 0, %s116
      %s131 = sphi 0, %s117
      %s135 = sphi 0, %s135
      %s137 = sphi 0, %s135
      %s138 = sphi 0, %s137
      %s152 = sphi 0, %s138
      %s156 = sphi 0, %s156
      %s158 = sphi 0, %s156
      %s159 = sphi 0, %s158
      %s173 = sphi 0, %s159
      %s177 = sphi 0, %s177
      %s179 = sphi 0, %s177
      %s180 = sphi 0, %s179
      %s194 = sphi 0, %s180
      %s198 = sphi 0, %s198
      %s200 = sphi 0, %s198
      %s201 = sphi 0, %s200
      %s215 = sphi 0, %s201
      %s219 = sphi 0, %s219
      %s221 = sphi 0, %s219
      %s222 = sphi 0, %s221
      %s236 = sphi 0, %s222
      %s240 = sphi 0, %s240
      %s242 = sphi 0, %s240
      %s243 = sphi 0, %s242
      %s257 = sphi 0, %s243
      %s261 = sphi 0, %s261
      %s263 = sphi 0, %s261
      %s264 = sphi 0, %s263
      %s278 = sphi 0, %s264
      %s282 = sphi 0, %s282
      %s284 = sphi 0, %s282
      %s285 = sphi 0, %s284
      %s299 = sphi 0, %s285
      %s303 = sphi 0, %s303
      %s305 = sphi 0, %s303
      %s306 = sphi 0, %s305
      %s320 = sphi 0, %s306
      %s326 = sphi 0, %s328
      %s329 = sphi 0, %s326
      %s330 = sphi 0, %s329
      %s346 = sphi 0, %s330
    $region4: #{tpu_custom_call.1} parent=1 // loop_header_branch
      %36 = sbr.rel (%p34) target = $region8
    $region5: #{tpu_custom_call.1} parent=1 // loop_body
      %s38 = ssub.s32 %s33, 1
      %s39 = ssub.s32 %s33, 2
      %s40 = sadd.s32 %s33, 1
      %s41 = ssub.s32 %s33, %s40
      %p42 = scmp.eq.s32.totalorder %s41, 0
      %s44 = sadd.s32 %s43, 1
      %s45 = scalar_select %p42, %s43, %s44
      %p48 = pneg %p42
      %p49 = scmp.eq.s32.totalorder %s33, 1
      %p50 = por %p48, %p49
      %p51 = scmp.ne.s32.totalorder %s43, %s46
      %p52 = scmp.eq.s32.totalorder %s33, 0
      %p53 = por %p51, %p52
      %p54 = scmp.ne.s32.totalorder %s43, %s46
      %p55 = scmp.eq.s32.totalorder %s38, 1
      %p56 = por %p54, %p55
      %p57 = scmp.ne.s32.totalorder %s46, %s47
      %p58 = scmp.eq.s32.totalorder %s38, 0
      %p59 = por %p57, %p58
      %p60 = scmp.ne.s32.totalorder %s46, %s47
      %p61 = scmp.eq.s32.totalorder %s39, 1
      %p62 = por %p60, %p61
      %p64 = scmp.ne.s32.totalorder %s47, %s63
      %p65 = scmp.eq.s32.totalorder %s39, 0
      %p66 = por %p64, %p65
      %s67 = ssub.s32 %s33, %s40
      %p68 = scmp.eq.s32.totalorder %s67, 0
      %s70 = sadd.s32 %s69, 1
      %s71 = scalar_select %p68, %s69, %s70
      %p74 = pneg %p68
      %p75 = scmp.eq.s32.totalorder %s33, 1
      %p76 = por %p74, %p75
      %p77 = scmp.ne.s32.totalorder %s69, %s72
      %p78 = scmp.eq.s32.totalorder %s33, 0
      %p79 = por %p77, %p78
      %p80 = scmp.ne.s32.totalorder %s69, %s72
      %p81 = scmp.eq.s32.totalorder %s38, 1
      %p82 = por %p80, %p81
      %p83 = scmp.ne.s32.totalorder %s72, %s73
      %p84 = scmp.eq.s32.totalorder %s38, 0
      %p85 = por %p83, %p84
      %p86 = scmp.ne.s32.totalorder %s72, %s73
      %p87 = scmp.eq.s32.totalorder %s39, 1
      %p88 = por %p86, %p87
      %p90 = scmp.ne.s32.totalorder %s73, %s89
      %p91 = scmp.eq.s32.totalorder %s39, 0
      %p92 = por %p90, %p91
      %s94 = sadd.s32 %s93, 1
      %p97 = scmp.eq.s32.totalorder %s33, 1
      %p98 = scmp.ne.s32.totalorder %s93, %s95
      %p99 = scmp.eq.s32.totalorder %s33, 0
      %p100 = por %p98, %p99
      %p101 = scmp.ne.s32.totalorder %s93, %s95
      %p102 = scmp.eq.s32.totalorder %s38, 1
      %p103 = por %p101, %p102
      %p104 = scmp.ne.s32.totalorder %s95, %s96
      %p105 = scmp.eq.s32.totalorder %s38, 0
      %p106 = por %p104, %p105
      %p107 = scmp.ne.s32.totalorder %s95, %s96
      %p108 = scmp.eq.s32.totalorder %s39, 1
      %p109 = por %p107, %p108
      %p111 = scmp.ne.s32.totalorder %s96, %s110
      %p112 = scmp.eq.s32.totalorder %s39, 0
      %p113 = por %p111, %p112
      %s115 = sadd.s32 %s114, 1
      %p118 = scmp.eq.s32.totalorder %s33, 1
      %p119 = scmp.ne.s32.totalorder %s114, %s116
      %p120 = scmp.eq.s32.totalorder %s33, 0
      %p121 = por %p119, %p120
      %p122 = scmp.ne.s32.totalorder %s114, %s116
      %p123 = scmp.eq.s32.totalorder %s38, 1
      %p124 = por %p122, %p123
      %p125 = scmp.ne.s32.totalorder %s116, %s117
      %p126 = scmp.eq.s32.totalorder %s38, 0
      %p127 = por %p125, %p126
      %p128 = scmp.ne.s32.totalorder %s116, %s117
      %p129 = scmp.eq.s32.totalorder %s39, 1
      %p130 = por %p128, %p129
      %p132 = scmp.ne.s32.totalorder %s117, %s131
      %p133 = scmp.eq.s32.totalorder %s39, 0
      %p134 = por %p132, %p133
      %s136 = sadd.s32 %s135, 1
      %p139 = scmp.eq.s32.totalorder %s33, 1
      %p140 = scmp.ne.s32.totalorder %s135, %s137
      %p141 = scmp.eq.s32.totalorder %s33, 0
      %p142 = por %p140, %p141
      %p143 = scmp.ne.s32.totalorder %s135, %s137
      %p144 = scmp.eq.s32.totalorder %s38, 1
      %p145 = por %p143, %p144
      %p146 = scmp.ne.s32.totalorder %s137, %s138
      %p147 = scmp.eq.s32.totalorder %s38, 0
      %p148 = por %p146, %p147
      %p149 = scmp.ne.s32.totalorder %s137, %s138
      %p150 = scmp.eq.s32.totalorder %s39, 1
      %p151 = por %p149, %p150
      %p153 = scmp.ne.s32.totalorder %s138, %s152
      %p154 = scmp.eq.s32.totalorder %s39, 0
      %p155 = por %p153, %p154
      %s157 = sadd.s32 %s156, 1
      %p160 = scmp.eq.s32.totalorder %s33, 1
      %p161 = scmp.ne.s32.totalorder %s156, %s158
      %p162 = scmp.eq.s32.totalorder %s33, 0
      %p163 = por %p161, %p162
      %p164 = scmp.ne.s32.totalorder %s156, %s158
      %p165 = scmp.eq.s32.totalorder %s38, 1
      %p166 = por %p164, %p165
      %p167 = scmp.ne.s32.totalorder %s158, %s159
      %p168 = scmp.eq.s32.totalorder %s38, 0
      %p169 = por %p167, %p168
      %p170 = scmp.ne.s32.totalorder %s158, %s159
      %p171 = scmp.eq.s32.totalorder %s39, 1
      %p172 = por %p170, %p171
      %p174 = scmp.ne.s32.totalorder %s159, %s173
      %p175 = scmp.eq.s32.totalorder %s39, 0
      %p176 = por %p174, %p175
      %s178 = sadd.s32 %s177, 1
      %p181 = scmp.eq.s32.totalorder %s33, 1
      %p182 = scmp.ne.s32.totalorder %s177, %s179
      %p183 = scmp.eq.s32.totalorder %s33, 0
      %p184 = por %p182, %p183
      %p185 = scmp.ne.s32.totalorder %s177, %s179
      %p186 = scmp.eq.s32.totalorder %s38, 1
      %p187 = por %p185, %p186
      %p188 = scmp.ne.s32.totalorder %s179, %s180
      %p189 = scmp.eq.s32.totalorder %s38, 0
      %p190 = por %p188, %p189
      %p191 = scmp.ne.s32.totalorder %s179, %s180
      %p192 = scmp.eq.s32.totalorder %s39, 1
      %p193 = por %p191, %p192
      %p195 = scmp.ne.s32.totalorder %s180, %s194
      %p196 = scmp.eq.s32.totalorder %s39, 0
      %p197 = por %p195, %p196
      %s199 = sadd.s32 %s198, 1
      %p202 = scmp.eq.s32.totalorder %s33, 1
      %p203 = scmp.ne.s32.totalorder %s198, %s200
      %p204 = scmp.eq.s32.totalorder %s33, 0
      %p205 = por %p203, %p204
      %p206 = scmp.ne.s32.totalorder %s198, %s200
      %p207 = scmp.eq.s32.totalorder %s38, 1
      %p208 = por %p206, %p207
      %p209 = scmp.ne.s32.totalorder %s200, %s201
      %p210 = scmp.eq.s32.totalorder %s38, 0
      %p211 = por %p209, %p210
      %p212 = scmp.ne.s32.totalorder %s200, %s201
      %p213 = scmp.eq.s32.totalorder %s39, 1
      %p214 = por %p212, %p213
      %p216 = scmp.ne.s32.totalorder %s201, %s215
      %p217 = scmp.eq.s32.totalorder %s39, 0
      %p218 = por %p216, %p217
      %s220 = sadd.s32 %s219, 1
      %p223 = scmp.eq.s32.totalorder %s33, 1
      %p224 = scmp.ne.s32.totalorder %s219, %s221
      %p225 = scmp.eq.s32.totalorder %s33, 0
      %p226 = por %p224, %p225
      %p227 = scmp.ne.s32.totalorder %s219, %s221
      %p228 = scmp.eq.s32.totalorder %s38, 1
      %p229 = por %p227, %p228
      %p230 = scmp.ne.s32.totalorder %s221, %s222
      %p231 = scmp.eq.s32.totalorder %s38, 0
      %p232 = por %p230, %p231
      %p233 = scmp.ne.s32.totalorder %s221, %s222
      %p234 = scmp.eq.s32.totalorder %s39, 1
      %p235 = por %p233, %p234
      %p237 = scmp.ne.s32.totalorder %s222, %s236
      %p238 = scmp.eq.s32.totalorder %s39, 0
      %p239 = por %p237, %p238
      %s241 = sadd.s32 %s240, 1
      %p244 = scmp.eq.s32.totalorder %s33, 1
      %p245 = scmp.ne.s32.totalorder %s240, %s242
      %p246 = scmp.eq.s32.totalorder %s33, 0
      %p247 = por %p245, %p246
      %p248 = scmp.ne.s32.totalorder %s240, %s242
      %p249 = scmp.eq.s32.totalorder %s38, 1
      %p250 = por %p248, %p249
      %p251 = scmp.ne.s32.totalorder %s242, %s243
      %p252 = scmp.eq.s32.totalorder %s38, 0
      %p253 = por %p251, %p252
      %p254 = scmp.ne.s32.totalorder %s242, %s243
      %p255 = scmp.eq.s32.totalorder %s39, 1
      %p256 = por %p254, %p255
      %p258 = scmp.ne.s32.totalorder %s243, %s257
      %p259 = scmp.eq.s32.totalorder %s39, 0
      %p260 = por %p258, %p259
      %s262 = sadd.s32 %s261, 1
      %p265 = scmp.eq.s32.totalorder %s33, 1
      %p266 = scmp.ne.s32.totalorder %s261, %s263
      %p267 = scmp.eq.s32.totalorder %s33, 0
      %p268 = por %p266, %p267
      %p269 = scmp.ne.s32.totalorder %s261, %s263
      %p270 = scmp.eq.s32.totalorder %s38, 1
      %p271 = por %p269, %p270
      %p272 = scmp.ne.s32.totalorder %s263, %s264
      %p273 = scmp.eq.s32.totalorder %s38, 0
      %p274 = por %p272, %p273
      %p275 = scmp.ne.s32.totalorder %s263, %s264
      %p276 = scmp.eq.s32.totalorder %s39, 1
      %p277 = por %p275, %p276
      %p279 = scmp.ne.s32.totalorder %s264, %s278
      %p280 = scmp.eq.s32.totalorder %s39, 0
      %p281 = por %p279, %p280
      %s283 = sadd.s32 %s282, 1
      %p286 = scmp.eq.s32.totalorder %s33, 1
      %p287 = scmp.ne.s32.totalorder %s282, %s284
      %p288 = scmp.eq.s32.totalorder %s33, 0
      %p289 = por %p287, %p288
      %p290 = scmp.ne.s32.totalorder %s282, %s284
      %p291 = scmp.eq.s32.totalorder %s38, 1
      %p292 = por %p290, %p291
      %p293 = scmp.ne.s32.totalorder %s284, %s285
      %p294 = scmp.eq.s32.totalorder %s38, 0
      %p295 = por %p293, %p294
      %p296 = scmp.ne.s32.totalorder %s284, %s285
      %p297 = scmp.eq.s32.totalorder %s39, 1
      %p298 = por %p296, %p297
      %p300 = scmp.ne.s32.totalorder %s285, %s299
      %p301 = scmp.eq.s32.totalorder %s39, 0
      %p302 = por %p300, %p301
      %s304 = sadd.s32 %s303, 1
      %p307 = scmp.eq.s32.totalorder %s33, 1
      %p308 = scmp.ne.s32.totalorder %s303, %s305
      %p309 = scmp.eq.s32.totalorder %s33, 0
      %p310 = por %p308, %p309
      %p311 = scmp.ne.s32.totalorder %s303, %s305
      %p312 = scmp.eq.s32.totalorder %s38, 1
      %p313 = por %p311, %p312
      %p314 = scmp.ne.s32.totalorder %s305, %s306
      %p315 = scmp.eq.s32.totalorder %s38, 0
      %p316 = por %p314, %p315
      %p317 = scmp.ne.s32.totalorder %s305, %s306
      %p318 = scmp.eq.s32.totalorder %s39, 1
      %p319 = por %p317, %p318
      %p321 = scmp.ne.s32.totalorder %s306, %s320
      %p322 = scmp.eq.s32.totalorder %s39, 0
      %p323 = por %p321, %p322
      %s324 = ssub.s32 %s33, %s40
      %p325 = scmp.eq.s32.totalorder %s324, 0
      %s327 = sadd.s32 %s326, 1
      %s328 = scalar_select %p325, %s326, %s327
      %p331 = pneg %p325
      %p332 = scmp.eq.s32.totalorder %s33, 1
      %p333 = por %p331, %p332
      %p334 = scmp.ne.s32.totalorder %s326, %s329
      %p335 = scmp.eq.s32.totalorder %s33, 0
      %p336 = por %p334, %p335
      %p337 = scmp.ne.s32.totalorder %s326, %s329
      %p338 = scmp.eq.s32.totalorder %s38, 1
      %p339 = por %p337, %p338
      %p340 = scmp.ne.s32.totalorder %s329, %s330
      %p341 = scmp.eq.s32.totalorder %s38, 0
      %p342 = por %p340, %p341
      %p343 = scmp.ne.s32.totalorder %s329, %s330
      %p344 = scmp.eq.s32.totalorder %s39, 1
      %p345 = por %p343, %p344
      %p347 = scmp.ne.s32.totalorder %s330, %s346
      %p348 = scmp.eq.s32.totalorder %s39, 0
      %p349 = por %p347, %p348
      %p350 = scmp.le.s32.totalorder 1, %s33
      %p351 = scmp.lt.s32.totalorder %s33, 3
      %p352 = pnand %p350, %p351
      %p353 = pneg %p352
      // Predicated region
      $region9: #{tpu_custom_call.1} parent=5 // pred_check
        _
      $region10: #{tpu_custom_call.1} parent=5 // pred_check_branch
        %355 = sbr.rel (%p352) target = $region12
      $region11: #{tpu_custom_call.1} parent=5 // pred_region
        %s356 = ssub.s32 %s33, 1
        // Predicated region
        $region13: #{tpu_custom_call.1} parent=11 // pred_check
          %p357 = pneg %p106
        $region14: #{tpu_custom_call.1} parent=11 // pred_check_branch
          %359 = sbr.rel (%p357) target = $region16
        $region15: #{tpu_custom_call.1} parent=11 // pred_region
          %s361 = ssub.s32 16, 16
          %362 = vsyncadd [#allocation6], %s361
          %s364 = sshll.u32 [#allocation7], 4
          %s365 = int_to_ptr.vmem [resolvable:$true] %s364
          %367 = dma.hbm_to_vmem [thread:$0]  %s2, 16, %s365, [#allocation6]
        $region16: #{tpu_custom_call.1} parent=11 // pred_fallthru
          _
        // Predicated region
        $region17: #{tpu_custom_call.1} parent=11 // pred_check
          %p368 = pneg %p127
        $region18: #{tpu_custom_call.1} parent=11 // pred_check_branch
          %370 = sbr.rel (%p368) target = $region20
        $region19: #{tpu_custom_call.1} parent=11 // pred_region
          %s372 = ssub.s32 128, 128
          %373 = vsyncadd [#allocation9], %s372
          %s374 = sshll.u32 [#allocation8], 4
          %s375 = int_to_ptr.vmem [resolvable:$true] %s374
          %380 = dma.hbm_to_vmem [thread:$0]  %s3, 128, %s375, [#allocation9], 64, 64, 4
        $region20: #{tpu_custom_call.1} parent=11 // pred_fallthru
          _
        // Predicated region
        $region21: #{tpu_custom_call.1} parent=11 // pred_check
          %p381 = pneg %p148
        $region22: #{tpu_custom_call.1} parent=11 // pred_check_branch
          %383 = sbr.rel (%p381) target = $region24
        $region23: #{tpu_custom_call.1} parent=11 // pred_region
          %s385 = ssub.s32 256, 256
          %386 = vsyncadd [#allocation9], %s385
          %s387 = sshll.u32 [#allocation10], 4
          %s388 = int_to_ptr.vmem [resolvable:$true] %s387
          %393 = dma.hbm_to_vmem [thread:$0]  %s4, 256, %s388, [#allocation9], 128, 128, 8
        $region24: #{tpu_custom_call.1} parent=11 // pred_fallthru
          _
        // Predicated region
        $region25: #{tpu_custom_call.1} parent=11 // pred_check
          %p394 = pneg %p169
        $region26: #{tpu_custom_call.1} parent=11 // pred_check_branch
          %396 = sbr.rel (%p394) target = $region28
        $region27: #{tpu_custom_call.1} parent=11 // pred_region
          %s398 = ssub.s32 256, 256
          %399 = vsyncadd [#allocation12], %s398
          %s400 = sshll.u32 [#allocation11], 4
          %s401 = int_to_ptr.vmem [resolvable:$true] %s400
          %406 = dma.hbm_to_vmem [thread:$0]  %s5, 256, %s401, [#allocation12], 128, 128, 8
        $region28: #{tpu_custom_call.1} parent=11 // pred_fallthru
          _
        // Predicated region
        $region29: #{tpu_custom_call.1} parent=11 // pred_check
          %p407 = pneg %p190
        $region30: #{tpu_custom_call.1} parent=11 // pred_check_branch
          %409 = sbr.rel (%p407) target = $region32
        $region31: #{tpu_custom_call.1} parent=11 // pred_region
          %s411 = ssub.s32 256, 256
          %412 = vsyncadd [#allocation12], %s411
          %s413 = sshll.u32 [#allocation13], 4
          %s414 = int_to_ptr.vmem [resolvable:$true] %s413
          %419 = dma.hbm_to_vmem [thread:$0]  %s6, 256, %s414, [#allocation12], 64, 64, 4
        $region32: #{tpu_custom_call.1} parent=11 // pred_fallthru
          _
        // Predicated region
        $region33: #{tpu_custom_call.1} parent=11 // pred_check
          %p420 = pneg %p211
        $region34: #{tpu_custom_call.1} parent=11 // pred_check_branch
          %422 = sbr.rel (%p420) target = $region36
        $region35: #{tpu_custom_call.1} parent=11 // pred_region
          %s424 = ssub.s32 256, 256
          %425 = vsyncadd [#allocation15], %s424
          %s426 = sshll.u32 [#allocation14], 4
          %s427 = int_to_ptr.vmem [resolvable:$true] %s426
          %432 = dma.hbm_to_vmem [thread:$0]  %s7, 256, %s427, [#allocation15], 64, 64, 4
        $region36: #{tpu_custom_call.1} parent=11 // pred_fallthru
          _
        // Predicated region
        $region37: #{tpu_custom_call.1} parent=11 // pred_check
          %p433 = pneg %p232
        $region38: #{tpu_custom_call.1} parent=11 // pred_check_branch
          %435 = sbr.rel (%p433) target = $region40
        $region39: #{tpu_custom_call.1} parent=11 // pred_region
          %s437 = ssub.s32 256, 256
          %438 = vsyncadd [#allocation15], %s437
          %s439 = sshll.u32 [#allocation16], 4
          %s440 = int_to_ptr.vmem [resolvable:$true] %s439
          %445 = dma.hbm_to_vmem [thread:$0]  %s8, 256, %s440, [#allocation15], 64, 64, 4
        $region40: #{tpu_custom_call.1} parent=11 // pred_fallthru
          _
        // Predicated region
        $region41: #{tpu_custom_call.1} parent=11 // pred_check
          %p446 = pneg %p253
        $region42: #{tpu_custom_call.1} parent=11 // pred_check_branch
          %448 = sbr.rel (%p446) target = $region44
        $region43: #{tpu_custom_call.1} parent=11 // pred_region
          %s450 = ssub.s32 16, 16
          %451 = vsyncadd [#allocation18], %s450
          %s453 = sshll.u32 [#allocation17], 4
          %s454 = int_to_ptr.vmem [resolvable:$true] %s453
          %456 = dma.hbm_to_vmem [thread:$0]  %s9, 16, %s454, [#allocation18]
        $region44: #{tpu_custom_call.1} parent=11 // pred_fallthru
          _
        // Predicated region
        $region45: #{tpu_custom_call.1} parent=11 // pred_check
          %p457 = pneg %p274
        $region46: #{tpu_custom_call.1} parent=11 // pred_check_branch
          %459 = sbr.rel (%p457) target = $region48
        $region47: #{tpu_custom_call.1} parent=11 // pred_region
          %s461 = ssub.s32 512, 512
          %462 = vsyncadd [#allocation18], %s461
          %s463 = sshll.u32 [#allocation19], 4
          %s464 = int_to_ptr.vmem [resolvable:$true] %s463
          %469 = dma.hbm_to_vmem [thread:$0]  %s10, 512, %s464, [#allocation18], 64, 64, 4
        $region48: #{tpu_custom_call.1} parent=11 // pred_fallthru
          _
        // Predicated region
        $region49: #{tpu_custom_call.1} parent=11 // pred_check
          %p470 = pneg %p295
        $region50: #{tpu_custom_call.1} parent=11 // pred_check_branch
          %472 = sbr.rel (%p470) target = $region52
        $region51: #{tpu_custom_call.1} parent=11 // pred_region
          %s474 = ssub.s32 256, 256
          %475 = vsyncadd [#allocation21], %s474
          %s476 = sshll.u32 [#allocation20], 4
          %s477 = int_to_ptr.vmem [resolvable:$true] %s476
          %482 = dma.hbm_to_vmem [thread:$0]  %s11, 256, %s477, [#allocation21], 64, 64, 4
        $region52: #{tpu_custom_call.1} parent=11 // pred_fallthru
          _
        // Predicated region
        $region53: #{tpu_custom_call.1} parent=11 // pred_check
          %p483 = pneg %p316
        $region54: #{tpu_custom_call.1} parent=11 // pred_check_branch
          %485 = sbr.rel (%p483) target = $region56
        $region55: #{tpu_custom_call.1} parent=11 // pred_region
          %s487 = ssub.s32 16, 16
          %488 = vsyncadd [#allocation21], %s487
          %s490 = sshll.u32 [#allocation22], 4
          %s491 = int_to_ptr.vmem [resolvable:$true] %s490
          %493 = dma.hbm_to_vmem [thread:$0]  %s12, 16, %s491, [#allocation21]
        $region56: #{tpu_custom_call.1} parent=11 // pred_fallthru
          _
      $region12: #{tpu_custom_call.1} parent=5 // pred_fallthru
        _
      %p494 = scmp.lt.s32.totalorder %s33, 2
      // Predicated region
      $region57: #{tpu_custom_call.1} parent=5 // pred_check
        %p495 = pneg %p494
      $region58: #{tpu_custom_call.1} parent=5 // pred_check_branch
        %497 = sbr.rel (%p495) target = $region60
      $region59: #{tpu_custom_call.1} parent=5 // pred_region
        // Predicated region
        $region61: #{tpu_custom_call.1} parent=59 // pred_check
          %p498 = pneg %p53
        $region62: #{tpu_custom_call.1} parent=59 // pred_check_branch
          %500 = sbr.rel (%p498) target = $region64
        $region63: #{tpu_custom_call.1} parent=59 // pred_region
          %s501 = sand.u32 %s43, 1
          %s502 = scalar_lea.sflag [#allocation3], %s501
          %s503 = sand.u32 %s43, 1
          %s504 = smul.addr %s503, 8
          %s505 = scalar_lea.vmem [#allocation2], %s504
          %s507 = ssub.s32 128, 128
          %508 = vsyncadd %s502, %s507
          %s509 = smul.addr %s33, 2
          %s510 = smul.addr %s509, 64
          %s511 = scalar_lea.hbm %s0, %s510
          %s512 = sshll.u32 %s505, 4
          %s513 = int_to_ptr.vmem [resolvable:$true] %s512
          %518 = dma.hbm_to_vmem [thread:$0]  %s511, 128, %s513, %s502, 64, 64, 4
        $region64: #{tpu_custom_call.1} parent=59 // pred_fallthru
          _
        // Predicated region
        $region65: #{tpu_custom_call.1} parent=59 // pred_check
          %p519 = pneg %p79
        $region66: #{tpu_custom_call.1} parent=59 // pred_check_branch
          %521 = sbr.rel (%p519) target = $region68
        $region67: #{tpu_custom_call.1} parent=59 // pred_region
          %s522 = sand.u32 %s33, 1
          %s523 = scalar_lea.sflag [#allocation6], %s522
          %s524 = sand.u32 %s69, 1
          %s525 = smul.addr %s524, 16
          %s526 = scalar_lea.vmem [#allocation5], %s525
          %s528 = ssub.s32 256, 256
          %529 = vsyncadd %s523, %s528
          %s530 = smul.addr %s33, 2
          %s531 = smul.addr %s530, 128
          %s532 = scalar_lea.hbm %s1, %s531
          %s533 = sshll.u32 %s526, 4
          %s534 = int_to_ptr.vmem [resolvable:$true] %s533
          %539 = dma.hbm_to_vmem [thread:$0]  %s532, 256, %s534, %s523, 128, 128, 8
        $region68: #{tpu_custom_call.1} parent=59 // pred_fallthru
          _
      $region60: #{tpu_custom_call.1} parent=5 // pred_fallthru
        _
      %p540 = scmp.le.s32.totalorder 1, %s33
      %p541 = scmp.lt.s32.totalorder %s33, 3
      %p542 = pnand %p540, %p541
      %p543 = pneg %p542
      // Predicated region
      $region69: #{tpu_custom_call.1} parent=5 // pred_check
        _
      $region70: #{tpu_custom_call.1} parent=5 // pred_check_branch
        %545 = sbr.rel (%p542) target = $region72
      $region71: #{tpu_custom_call.1} parent=5 // pred_region
        %s546 = ssub.s32 %s33, 1
        %s547 = sand.u32 %s46, 1
        %s548 = scalar_lea.sflag [#allocation3], %s547
        %s549 = sand.u32 %s46, 1
        %s550 = smul.addr %s549, 8
        %s551 = scalar_lea.vmem [#allocation2], %s550
        // Predicated region
        $region73: #{tpu_custom_call.1} parent=71 // pred_check
          %p552 = pneg %p59
        $region74: #{tpu_custom_call.1} parent=71 // pred_check_branch
          %554 = sbr.rel (%p552) target = $region76
        $region75: #{tpu_custom_call.1} parent=71 // pred_region
          %555 = dma.done %s548, 128
        $region76: #{tpu_custom_call.1} parent=71 // pred_fallthru
          _
        %s556 = sand.u32 %s38, 1
        %s557 = scalar_lea.sflag [#allocation6], %s556
        %s558 = sand.u32 %s72, 1
        %s559 = smul.addr %s558, 16
        %s560 = scalar_lea.vmem [#allocation5], %s559
        // Predicated region
        $region77: #{tpu_custom_call.1} parent=71 // pred_check
          %p561 = pneg %p85
        $region78: #{tpu_custom_call.1} parent=71 // pred_check_branch
          %563 = sbr.rel (%p561) target = $region80
        $region79: #{tpu_custom_call.1} parent=71 // pred_region
          %564 = dma.done %s557, 256
        $region80: #{tpu_custom_call.1} parent=71 // pred_fallthru
          _
        // Predicated region
        $region81: #{tpu_custom_call.1} parent=71 // pred_check
          %p565 = pneg %p106
        $region82: #{tpu_custom_call.1} parent=71 // pred_check_branch
          %567 = sbr.rel (%p565) target = $region84
        $region83: #{tpu_custom_call.1} parent=71 // pred_region
          %568 = dma.done [#allocation6], 16
        $region84: #{tpu_custom_call.1} parent=71 // pred_fallthru
          _
        // Predicated region
        $region85: #{tpu_custom_call.1} parent=71 // pred_check
          %p569 = pneg %p127
        $region86: #{tpu_custom_call.1} parent=71 // pred_check_branch
          %571 = sbr.rel (%p569) target = $region88
        $region87: #{tpu_custom_call.1} parent=71 // pred_region
          %572 = dma.done [#allocation9], 128
        $region88: #{tpu_custom_call.1} parent=71 // pred_fallthru
          _
        // Predicated region
        $region89: #{tpu_custom_call.1} parent=71 // pred_check
          %p573 = pneg %p148
        $region90: #{tpu_custom_call.1} parent=71 // pred_check_branch
          %575 = sbr.rel (%p573) target = $region92
        $region91: #{tpu_custom_call.1} parent=71 // pred_region
          %576 = dma.done [#allocation9], 256
        $region92: #{tpu_custom_call.1} parent=71 // pred_fallthru
          _
        // Predicated region
        $region93: #{tpu_custom_call.1} parent=71 // pred_check
          %p577 = pneg %p169
        $region94: #{tpu_custom_call.1} parent=71 // pred_check_branch
          %579 = sbr.rel (%p577) target = $region96
        $region95: #{tpu_custom_call.1} parent=71 // pred_region
          %580 = dma.done [#allocation12], 256
        $region96: #{tpu_custom_call.1} parent=71 // pred_fallthru
          _
        // Predicated region
        $region97: #{tpu_custom_call.1} parent=71 // pred_check
          %p581 = pneg %p190
        $region98: #{tpu_custom_call.1} parent=71 // pred_check_branch
          %583 = sbr.rel (%p581) target = $region100
        $region99: #{tpu_custom_call.1} parent=71 // pred_region
          %584 = dma.done [#allocation12], 256
        $region100: #{tpu_custom_call.1} parent=71 // pred_fallthru
          _
        // Predicated region
        $region101: #{tpu_custom_call.1} parent=71 // pred_check
          %p585 = pneg %p211
        $region102: #{tpu_custom_call.1} parent=71 // pred_check_branch
          %587 = sbr.rel (%p585) target = $region104
        $region103: #{tpu_custom_call.1} parent=71 // pred_region
          %588 = dma.done [#allocation15], 256
        $region104: #{tpu_custom_call.1} parent=71 // pred_fallthru
          _
        // Predicated region
        $region105: #{tpu_custom_call.1} parent=71 // pred_check
          %p589 = pneg %p232
        $region106: #{tpu_custom_call.1} parent=71 // pred_check_branch
          %591 = sbr.rel (%p589) target = $region108
        $region107: #{tpu_custom_call.1} parent=71 // pred_region
          %592 = dma.done [#allocation15], 256
        $region108: #{tpu_custom_call.1} parent=71 // pred_fallthru
          _
        // Predicated region
        $region109: #{tpu_custom_call.1} parent=71 // pred_check
          %p593 = pneg %p253
        $region110: #{tpu_custom_call.1} parent=71 // pred_check_branch
          %595 = sbr.rel (%p593) target = $region112
        $region111: #{tpu_custom_call.1} parent=71 // pred_region
          %596 = dma.done [#allocation18], 16
        $region112: #{tpu_custom_call.1} parent=71 // pred_fallthru
          _
        // Predicated region
        $region113: #{tpu_custom_call.1} parent=71 // pred_check
          %p597 = pneg %p274
        $region114: #{tpu_custom_call.1} parent=71 // pred_check_branch
          %599 = sbr.rel (%p597) target = $region116
        $region115: #{tpu_custom_call.1} parent=71 // pred_region
          %600 = dma.done [#allocation18], 512
        $region116: #{tpu_custom_call.1} parent=71 // pred_fallthru
          _
        // Predicated region
        $region117: #{tpu_custom_call.1} parent=71 // pred_check
          %p601 = pneg %p295
        $region118: #{tpu_custom_call.1} parent=71 // pred_check_branch
          %603 = sbr.rel (%p601) target = $region120
        $region119: #{tpu_custom_call.1} parent=71 // pred_region
          %604 = dma.done [#allocation21], 256
        $region120: #{tpu_custom_call.1} parent=71 // pred_fallthru
          _
        // Predicated region
        $region121: #{tpu_custom_call.1} parent=71 // pred_check
          %p605 = pneg %p316
        $region122: #{tpu_custom_call.1} parent=71 // pred_check_branch
          %607 = sbr.rel (%p605) target = $region124
        $region123: #{tpu_custom_call.1} parent=71 // pred_region
          %608 = dma.done [#allocation21], 16
        $region124: #{tpu_custom_call.1} parent=71 // pred_fallthru
          _
        %s609 = sand.u32 %s46, 1
        %s610 = scalar_lea.sflag [#allocation3], %s609
        %s611 = sand.u32 %s46, 1
        %s612 = smul.addr %s611, 8
        %s613 = scalar_lea.vmem [#allocation2], %s612
        %p614 = pneg %p59
        %p615 = pneg %p56
        %s616 = sand.u32 %s38, 1
        %s617 = scalar_lea.sflag [#allocation6], %s616
        %s618 = sand.u32 %s72, 1
        %s619 = smul.addr %s618, 16
        %s620 = scalar_lea.vmem [#allocation5], %s619
        %p621 = pneg %p85
        %p622 = pneg %p82
        %p623 = pneg %p106
        %p624 = pneg %p103
        %p625 = pneg %p127
        %p626 = pneg %p124
        %p627 = pneg %p148
        %p628 = pneg %p145
        %p629 = pneg %p169
        %p630 = pneg %p166
        %p631 = pneg %p190
        %p632 = pneg %p187
        %p633 = pneg %p211
        %p634 = pneg %p208
        %p635 = pneg %p232
        %p636 = pneg %p229
        %p637 = pneg %p253
        %p638 = pneg %p250
        %p639 = pneg %p274
        %p640 = pneg %p271
        %p641 = pneg %p295
        %p642 = pneg %p292
        %p643 = pneg %p316
        %p644 = pneg %p313
        %p645 = pneg %p342
        %p646 = pneg %p339
        %s647 = sand.u32 %s329, 1
        %s648 = scalar_lea.sflag [#allocation4], %s647
        %s649 = sand.u32 %s329, 1
        %s650 = smul.addr %s649, 8
        %s651 = scalar_lea.vmem [#allocation23], %s650
        %v659 = vld [vmem:[%s551] sm:$0xf]
        %v660 = vld [vmem:[%s551 + $0x4] sm:$0xf]
        %v661 = vld [vmem:[%s560] sm:$0xff]
        %v662 = vld [vmem:[%s560 + $0x8] sm:$0xff]
        %v663 = vld [vmem:[#allocation7] sm:$0x1]
        %vm664 = vcmp.gt.f32.partialorder %v661, 0.0
        %vm665 = vcmp.gt.f32.partialorder %v662, 0.0
        %v666 = vsel %vm664, 1, 0
        %v667 = vsel %vm665, 1, 0
        %668 = vset.pattern.permute.xlu0 0
        %669 = vperm.xlu0 %668, %v666
        %v670 = vpop.permute.xlu0 %669
        %671 = vset.pattern.permute.xlu0 0
        %672 = vperm.xlu0 %671, %v667
        %v673 = vpop.permute.xlu0 %672
        %vm674 = vcmp.eq.s32.totalorder %v670, 1
        %vm675 = vcmp.eq.s32.totalorder %v673, 1
        %v677 = vpack.i.b16 %v663, %v663
        %v679 = vlaneseq
        %v680 = vshrl.u32 %v679, 7
        %v681 = vsub.s32 0, %v680
        %v682 = vrot.slane %v677, %v681
        %vm683 = vmpackc.low %vm674, %vm674
        %vm684 = vmpackc.low %vm675, %vm675
        %v685 = vsel %vm683, 65537, 0
        %v686 = vsel %vm684, 65537, 0
        %v687 = vunpack.c.l.b16 %v685
        %v688 = vunpack.c.l.b16 %v686
        %v689 = vpack.c.b16 %v688, %v687
        %vm690 = vcmp.ne.s16.totalorder %v689, 0
        %v693 = vunpack.c.l.b16 %v659
        %v694 = vunpack.c.l.b16 %v660
        %v695 = vpack.c.b16 %v694, %v693
        %v697 = vsel %vm690, %v682, %v695
        %v698 = vld [vmem:[#allocation11] sm:$0xff]
        %v699 = vld [vmem:[#allocation11 + $0x8] sm:$0x3]
        %v700 = vld [vmem:[#allocation8] sm:$0xf]
        %v701 = vld [vmem:[#allocation8 + $0x4] sm:$0xf]
        %v702 = vlaneseq
        %v703 = vshrl.u32 %v702, 7
        %v704 = vsub.s32 0, %v703
        %v705 = vrot.slane %v698, %v704
        %v708 = vunpack.c.l.b16 %v700
        %v709 = vunpack.c.l.b16 %v701
        %v710 = vpack.c.b16 %v709, %v708
        %vm712 = vcmask 130048
        %v714 = vsel %vm712, %v697, 0
        %716 = vmatprep.subr.bf16.mxu0 0
        %717 = vmatpush1.bf16.msra.mxu0 %v710
        %718 = vmatprep.subr.bf16.mxu0 0
        %719 = vmatpush1.bf16.msra.mxu0 0
        %720 = vmatprep.subr.bf16.mxu0 0
        %721 = vmatpush1.bf16.msra.mxu0 0
        %722 = vmatprep.subr.bf16.mxu0 0
        %723 = vmatpush1.bf16.msra.mxu0 0
        %724 = vmatprep.subr.bf16.mxu0 0
        %725 = vmatpush1.bf16.msra.mxu0 0
        %726 = vmatprep.subr.bf16.mxu0 0
        %727 = vmatpush1.bf16.msra.mxu0 0
        %728 = vmatprep.subr.bf16.mxu0 0
        %729 = vmatpush1.bf16.msra.mxu0 0
        %730 = vmatprep.subr.bf16.mxu0 0
        %731 = vmatpush1.bf16.msra.mxu0 0
        %732 = vmatprep.subr.bf16.mxu0 0
        %733 = vmatpush1.bf16.msra.mxu0 0
        %734 = vmatprep.subr.bf16.mxu0 0
        %735 = vmatpush1.bf16.msra.mxu0 0
        %736 = vmatprep.subr.bf16.mxu0 0
        %737 = vmatpush1.bf16.msra.mxu0 0
        %738 = vmatprep.subr.bf16.mxu0 0
        %739 = vmatpush1.bf16.msra.mxu0 0
        %740 = vmatprep.subr.bf16.mxu0 0
        %741 = vmatpush1.bf16.msra.mxu0 0
        %742 = vmatprep.subr.bf16.mxu0 0
        %743 = vmatpush1.bf16.msra.mxu0 0
        %744 = vmatprep.subr.bf16.mxu0 0
        %745 = vmatpush1.bf16.msra.mxu0 0
        %746 = vmatprep.subr.bf16.mxu0 0
        %747 = vmatpush1.bf16.msra.mxu0 0
        %748 = vmatprep.mubr.bf16.mxu0 0
        %749 = vmatmul.mubr.bf16.gmra.mrb[0].mxu0 %v714
        %v750 = vpop.f32.mrb[0].mxu0
        %v751 = vadd.f32 %v705, %v750
        %v752 = vpop.f32.mrb[0].mxu0
        %v753 = vpop.f32.mrb[0].mxu0
        %v754 = vadd.f32 %v705, %v753
        %v755 = vpop.f32.mrb[0].mxu0
        %756 = vdwg.mxu0
        %v757 = vld [vmem:[#allocation10] sm:$0xff]
        %v758 = vld [vmem:[#allocation10 + $0x8] sm:$0xff]
        %v759 = vadd.f32 %v751, %v757
        %v760 = vadd.f32 %v754, %v758
        %vm761 = vcmask 261120
        %v762 = vsel %vm761, %v759, 0.0
        %763 = vadd.xlane.f32.xlu0 %v762
        %v764 = vpop.xlane.xlu0 %763
        %v765 = vsel %vm761, %v760, 0.0
        %766 = vadd.xlane.f32.xlu0 %v765
        %v767 = vpop.xlane.xlu0 %766
        %v768 = vrcp.pop 32.0
        %v769 = vmul.f32 %v764, %v768
        %v770 = vmul.f32 %v767, %v768
        %v771 = vsub.f32 %v759, %v769
        %v772 = vsub.f32 %v760, %v770
        %v773 = vmul.f32 %v771, %v771
        %v774 = vmul.f32 %v772, %v772
        %v775 = vsel %vm761, %v773, 0.0
        %776 = vadd.xlane.f32.xlu0 %v775
        %v777 = vpop.xlane.xlu0 %776
        %v778 = vsel %vm761, %v774, 0.0
        %779 = vadd.xlane.f32.xlu0 %v778
        %v780 = vpop.xlane.xlu0 %779
        %v781 = vmul.f32 %v777, %v768
        %v782 = vmul.f32 %v780, %v768
        %v783 = vadd.f32 %v781, 1e-05
        %v784 = vadd.f32 %v782, 1e-05
        %v785 = vrsqrt.pop %v783
        %v786 = vrsqrt.pop %v784
        %v787 = vmul.f32 %v771, %v785
        %v788 = vmul.f32 %v772, %v786
        %v789 = vlaneseq
        %v790 = vshrl.u32 %v789, 7
        %v791 = vsub.s32 1, %v790
        %v792 = vrot.slane %v698, %v791
        %v793 = vmul.f32 %v787, %v792
        %v794 = vmul.f32 %v788, %v792
        %v795 = vlaneseq
        %v796 = vshrl.u32 %v795, 7
        %v797 = vsub.s32 2, %v796
        %v798 = vrot.slane %v698, %v797
        %v799 = vadd.f32 %v793, %v798
        %v800 = vadd.f32 %v794, %v798
        %v801 = vpack.c.bf16 %v800, %v799
        %v802 = vld [vmem:[#allocation13] sm:$0xf]
        %v803 = vld [vmem:[#allocation13 + $0x4] sm:$0xf]
        %v804 = vld [vmem:[#allocation13 + $0x8] sm:$0xf]
        %v805 = vld [vmem:[#allocation13 + $0xc] sm:$0xf]
        %v810 = vunpack.c.l.b16 %v802
        %v811 = vunpack.c.l.b16 %v803
        %v812 = vunpack.c.l.b16 %v804
        %v813 = vunpack.c.l.b16 %v805
        %v814 = vpack.c.b16 %v811, %v810
        %v815 = vpack.c.b16 %v813, %v812
        %v819 = vsel %vm761, %v801, 0
        %821 = vmatprep.subr.bf16.mxu0 0
        %822 = vmatpush1.bf16.msra.mxu0 %v814
        %823 = vmatprep.subr.bf16.mxu0 0
        %824 = vmatpush1.bf16.msra.mxu0 %v815
        %825 = vmatprep.subr.bf16.mxu0 0
        %826 = vmatpush1.bf16.msra.mxu0 0
        %827 = vmatprep.subr.bf16.mxu0 0
        %828 = vmatpush1.bf16.msra.mxu0 0
        %829 = vmatprep.subr.bf16.mxu0 0
        %830 = vmatpush1.bf16.msra.mxu0 0
        %831 = vmatprep.subr.bf16.mxu0 0
        %832 = vmatpush1.bf16.msra.mxu0 0
        %833 = vmatprep.subr.bf16.mxu0 0
        %834 = vmatpush1.bf16.msra.mxu0 0
        %835 = vmatprep.subr.bf16.mxu0 0
        %836 = vmatpush1.bf16.msra.mxu0 0
        %837 = vmatprep.subr.bf16.mxu0 0
        %838 = vmatpush1.bf16.msra.mxu0 0
        %839 = vmatprep.subr.bf16.mxu0 0
        %840 = vmatpush1.bf16.msra.mxu0 0
        %841 = vmatprep.subr.bf16.mxu0 0
        %842 = vmatpush1.bf16.msra.mxu0 0
        %843 = vmatprep.subr.bf16.mxu0 0
        %844 = vmatpush1.bf16.msra.mxu0 0
        %845 = vmatprep.subr.bf16.mxu0 0
        %846 = vmatpush1.bf16.msra.mxu0 0
        %847 = vmatprep.subr.bf16.mxu0 0
        %848 = vmatpush1.bf16.msra.mxu0 0
        %849 = vmatprep.subr.bf16.mxu0 0
        %850 = vmatpush1.bf16.msra.mxu0 0
        %851 = vmatprep.subr.bf16.mxu0 0
        %852 = vmatpush1.bf16.msra.mxu0 0
        %853 = vmatprep.mubr.bf16.mxu0 0
        %854 = vmatmul.mubr.bf16.gmra.mrb[0].mxu0 %v819
        %v855 = vpop.f32.mrb[0].mxu0
        %v856 = vadd.f32 0.0, %v855
        %v857 = vpop.f32.mrb[0].mxu0
        %v858 = vpop.f32.mrb[0].mxu0
        %v859 = vadd.f32 0.0, %v858
        %v860 = vpop.f32.mrb[0].mxu0
        %861 = vdwg.mxu0
        %v862 = vlaneseq
        %v863 = vshrl.u32 %v862, 7
        %v864 = vsub.s32 3, %v863
        %v865 = vrot.slane %v698, %v864
        %v866 = vadd.f32 %v856, %v865
        %v867 = vadd.f32 %v859, %v865
        %v868 = vpack.c.bf16 %v867, %v866
        %v869 = vlaneseq
        %v870 = vshrl.u32 %v869, 7
        %v871 = vsub.s32 4, %v870
        %v872 = vrot.slane %v698, %v871
        %874 = vrot.lane.b32.xlu0 %v872, 32
        %v875 = vpop.permute.xlu0 %874
        %v877 = vadd.f32 %v856, %v875
        %v878 = vadd.f32 %v859, %v875
        %v879 = vpack.c.bf16 %v878, %v877
        %v880 = vlaneseq
        %v881 = vshrl.u32 %v880, 7
        %v882 = vsub.s32 5, %v881
        %v883 = vrot.slane %v698, %v882
        %885 = vrot.lane.b32.xlu0 %v883, 64
        %v886 = vpop.permute.xlu0 %885
        %v888 = vadd.f32 %v856, %v886
        %v889 = vadd.f32 %v859, %v886
        %v890 = vpack.c.bf16 %v889, %v888
        %892 = vrot.lane.b32.xlu0 %v879, 96
        %v893 = vpop.permute.xlu0 %892
        %v895 = vsel %vm761, %v868, 0
        %v898 = vsel %vm761, %v893, 0
        %900 = vmatprep.subr.bf16.mxu0 0
        %901 = vmatpush1.bf16.xpose.msra.mxu0 %v898
        %902 = vmatprep.subr.bf16.mxu0 0
        %903 = vmatpush1.bf16.xpose.msra.mxu0 0
        %904 = vmatprep.subr.bf16.mxu0 0
        %905 = vmatpush1.bf16.xpose.msra.mxu0 0
        %906 = vmatprep.subr.bf16.mxu0 0
        %907 = vmatpush1.bf16.xpose.msra.mxu0 0
        %908 = vmatprep.subr.bf16.mxu0 0
        %909 = vmatpush1.bf16.xpose.msra.mxu0 0
        %910 = vmatprep.subr.bf16.mxu0 0
        %911 = vmatpush1.bf16.xpose.msra.mxu0 0
        %912 = vmatprep.subr.bf16.mxu0 0
        %913 = vmatpush1.bf16.xpose.msra.mxu0 0
        %914 = vmatprep.subr.bf16.mxu0 0
        %915 = vmatpush1.bf16.xpose.msra.mxu0 0
        %916 = vmatprep.subr.bf16.mxu0 0
        %917 = vmatpush1.bf16.xpose.msra.mxu0 0
        %918 = vmatprep.subr.bf16.mxu0 0
        %919 = vmatpush1.bf16.xpose.msra.mxu0 0
        %920 = vmatprep.subr.bf16.mxu0 0
        %921 = vmatpush1.bf16.xpose.msra.mxu0 0
        %922 = vmatprep.subr.bf16.mxu0 0
        %923 = vmatpush1.bf16.xpose.msra.mxu0 0
        %924 = vmatprep.subr.bf16.mxu0 0
        %925 = vmatpush1.bf16.xpose.msra.mxu0 0
        %926 = vmatprep.subr.bf16.mxu0 0
        %927 = vmatpush1.bf16.xpose.msra.mxu0 0
        %928 = vmatprep.subr.bf16.mxu0 0
        %929 = vmatpush1.bf16.xpose.msra.mxu0 0
        %930 = vmatprep.subr.bf16.mxu0 0
        %931 = vmatpush1.bf16.xpose.msra.mxu0 0
        %932 = vmatprep.mubr.bf16.mxu0 0
        %933 = vmatmul.mubr.bf16.gmra.mrb[0].mxu0 %v895
        %v934 = vpop.f32.mrb[0].mxu0
        %v935 = vadd.f32 0.0, %v934
        %v936 = vpop.f32.mrb[0].mxu0
        %v937 = vpop.f32.mrb[0].mxu0
        %v938 = vadd.f32 0.0, %v937
        %v939 = vpop.f32.mrb[0].mxu0
        %940 = vdwg.mxu0
        %v941 = vsel %vm712, %v935, -inf
        %942 = vmax.xlane.f32.xlu0 %v941
        %v943 = vpop.xlane.xlu0 %942
        %v944 = vsel %vm712, %v938, -inf
        %945 = vmax.xlane.f32.xlu0 %v944
        %v946 = vpop.xlane.xlu0 %945
        %v947 = vsub.f32 %v935, %v943
        %v948 = vsub.f32 %v938, %v946
        %v949 = vpack.c.bf16 %v948, %v947
        %v951 = vmul.bf16 %v949, 1069105081
        %v952 = vpow.bf16.pop %v951
        %v953 = vunpack.c.l.bf16 %v952
        %v954 = vunpack.c.h.bf16 %v952
        %v955 = vsel %vm712, %v953, 0.0
        %956 = vadd.xlane.f32.xlu0 %v955
        %v957 = vpop.xlane.xlu0 %956
        %v958 = vsel %vm712, %v954, 0.0
        %959 = vadd.xlane.f32.xlu0 %v958
        %v960 = vpop.xlane.xlu0 %959
        %962 = vrot.lane.b32.xlu0 %v890, 64
        %v963 = vpop.permute.xlu0 %962
        %v966 = vsel %vm712, %v952, 0
        %968 = vmatprep.subr.bf16.mxu0 0
        %969 = vmatpush1.bf16.msra.mxu0 %v963
        %970 = vmatprep.subr.bf16.mxu0 0
        %971 = vmatpush1.bf16.msra.mxu0 0
        %972 = vmatprep.subr.bf16.mxu0 0
        %973 = vmatpush1.bf16.msra.mxu0 0
        %974 = vmatprep.subr.bf16.mxu0 0
        %975 = vmatpush1.bf16.msra.mxu0 0
        %976 = vmatprep.subr.bf16.mxu0 0
        %977 = vmatpush1.bf16.msra.mxu0 0
        %978 = vmatprep.subr.bf16.mxu0 0
        %979 = vmatpush1.bf16.msra.mxu0 0
        %980 = vmatprep.subr.bf16.mxu0 0
        %981 = vmatpush1.bf16.msra.mxu0 0
        %982 = vmatprep.subr.bf16.mxu0 0
        %983 = vmatpush1.bf16.msra.mxu0 0
        %984 = vmatprep.subr.bf16.mxu0 0
        %985 = vmatpush1.bf16.msra.mxu0 0
        %986 = vmatprep.subr.bf16.mxu0 0
        %987 = vmatpush1.bf16.msra.mxu0 0
        %988 = vmatprep.subr.bf16.mxu0 0
        %989 = vmatpush1.bf16.msra.mxu0 0
        %990 = vmatprep.subr.bf16.mxu0 0
        %991 = vmatpush1.bf16.msra.mxu0 0
        %992 = vmatprep.subr.bf16.mxu0 0
        %993 = vmatpush1.bf16.msra.mxu0 0
        %994 = vmatprep.subr.bf16.mxu0 0
        %995 = vmatpush1.bf16.msra.mxu0 0
        %996 = vmatprep.subr.bf16.mxu0 0
        %997 = vmatpush1.bf16.msra.mxu0 0
        %998 = vmatprep.subr.bf16.mxu0 0
        %999 = vmatpush1.bf16.msra.mxu0 0
        %1000 = vmatprep.mubr.bf16.mxu0 0
        %1001 = vmatmul.mubr.bf16.gmra.mrb[0].mxu0 %v966
        %v1002 = vpop.f32.mrb[0].mxu0
        %v1003 = vadd.f32 0.0, %v1002
        %v1004 = vpop.f32.mrb[0].mxu0
        %v1005 = vpop.f32.mrb[0].mxu0
        %v1006 = vadd.f32 0.0, %v1005
        %v1007 = vpop.f32.mrb[0].mxu0
        %1008 = vdwg.mxu0
        %v1009 = vrcp.pop %v957
        %v1010 = vrcp.pop %v960
        %v1011 = vmul.f32 %v1003, %v1009
        %v1012 = vmul.f32 %v1006, %v1010
        %v1013 = vpack.c.bf16 %v1012, %v1011
        %v1014 = vld [vmem:[#allocation14] sm:$0xf]
        %v1015 = vld [vmem:[#allocation14 + $0x4] sm:$0xf]
        %v1016 = vld [vmem:[#allocation14 + $0x8] sm:$0xf]
        %v1017 = vld [vmem:[#allocation14 + $0xc] sm:$0xf]
        %v1022 = vunpack.c.l.b16 %v1014
        %v1023 = vunpack.c.l.b16 %v1015
        %v1024 = vunpack.c.l.b16 %v1016
        %v1025 = vunpack.c.l.b16 %v1017
        %v1026 = vpack.c.b16 %v1023, %v1022
        %v1027 = vpack.c.b16 %v1025, %v1024
        %v1031 = vsel %vm761, %v1013, 0
        %1033 = vmatprep.subr.bf16.mxu0 0
        %1034 = vmatpush1.bf16.msra.mxu0 %v1026
        %1035 = vmatprep.subr.bf16.mxu0 0
        %1036 = vmatpush1.bf16.msra.mxu0 %v1027
        %1037 = vmatprep.subr.bf16.mxu0 0
        %1038 = vmatpush1.bf16.msra.mxu0 0
        %1039 = vmatprep.subr.bf16.mxu0 0
        %1040 = vmatpush1.bf16.msra.mxu0 0
        %1041 = vmatprep.subr.bf16.mxu0 0
        %1042 = vmatpush1.bf16.msra.mxu0 0
        %1043 = vmatprep.subr.bf16.mxu0 0
        %1044 = vmatpush1.bf16.msra.mxu0 0
        %1045 = vmatprep.subr.bf16.mxu0 0
        %1046 = vmatpush1.bf16.msra.mxu0 0
        %1047 = vmatprep.subr.bf16.mxu0 0
        %1048 = vmatpush1.bf16.msra.mxu0 0
        %1049 = vmatprep.subr.bf16.mxu0 0
        %1050 = vmatpush1.bf16.msra.mxu0 0
        %1051 = vmatprep.subr.bf16.mxu0 0
        %1052 = vmatpush1.bf16.msra.mxu0 0
        %1053 = vmatprep.subr.bf16.mxu0 0
        %1054 = vmatpush1.bf16.msra.mxu0 0
        %1055 = vmatprep.subr.bf16.mxu0 0
        %1056 = vmatpush1.bf16.msra.mxu0 0
        %1057 = vmatprep.subr.bf16.mxu0 0
        %1058 = vmatpush1.bf16.msra.mxu0 0
        %1059 = vmatprep.subr.bf16.mxu0 0
        %1060 = vmatpush1.bf16.msra.mxu0 0
        %1061 = vmatprep.subr.bf16.mxu0 0
        %1062 = vmatpush1.bf16.msra.mxu0 0
        %1063 = vmatprep.subr.bf16.mxu0 0
        %1064 = vmatpush1.bf16.msra.mxu0 0
        %1065 = vmatprep.mubr.bf16.mxu0 0
        %1066 = vmatmul.mubr.bf16.gmra.mrb[0].mxu0 %v1031
        %v1067 = vpop.f32.mrb[0].mxu0
        %v1068 = vadd.f32 0.0, %v1067
        %v1069 = vpop.f32.mrb[0].mxu0
        %v1070 = vpop.f32.mrb[0].mxu0
        %v1071 = vadd.f32 0.0, %v1070
        %v1072 = vpop.f32.mrb[0].mxu0
        %1073 = vdwg.mxu0
        %v1074 = vadd.f32 %v759, %v1068
        %v1075 = vadd.f32 %v760, %v1071
        %v1076 = vlaneseq
        %v1077 = vshrl.u32 %v1076, 7
        %v1078 = vsub.s32 6, %v1077
        %v1079 = vrot.slane %v698, %v1078
        %v1080 = vadd.f32 %v1074, %v1079
        %v1081 = vadd.f32 %v1075, %v1079
        %v1082 = vsel %vm761, %v1080, 0.0
        %1083 = vadd.xlane.f32.xlu0 %v1082
        %v1084 = vpop.xlane.xlu0 %1083
        %v1085 = vsel %vm761, %v1081, 0.0
        %1086 = vadd.xlane.f32.xlu0 %v1085
        %v1087 = vpop.xlane.xlu0 %1086
        %v1088 = vmul.f32 %v1084, %v768
        %v1089 = vmul.f32 %v1087, %v768
        %v1090 = vsub.f32 %v1080, %v1088
        %v1091 = vsub.f32 %v1081, %v1089
        %v1092 = vmul.f32 %v1090, %v1090
        %v1093 = vmul.f32 %v1091, %v1091
        %v1094 = vsel %vm761, %v1092, 0.0
        %1095 = vadd.xlane.f32.xlu0 %v1094
        %v1096 = vpop.xlane.xlu0 %1095
        %v1097 = vsel %vm761, %v1093, 0.0
        %1098 = vadd.xlane.f32.xlu0 %v1097
        %v1099 = vpop.xlane.xlu0 %1098
        %v1100 = vmul.f32 %v1096, %v768
        %v1101 = vmul.f32 %v1099, %v768
        %v1102 = vadd.f32 %v1100, 1e-05
        %v1103 = vadd.f32 %v1101, 1e-05
        %v1104 = vrsqrt.pop %v1102
        %v1105 = vrsqrt.pop %v1103
        %v1106 = vmul.f32 %v1090, %v1104
        %v1107 = vmul.f32 %v1091, %v1105
        %v1108 = vlaneseq
        %v1109 = vshrl.u32 %v1108, 7
        %v1110 = vsub.s32 7, %v1109
        %v1111 = vrot.slane %v698, %v1110
        %v1112 = vmul.f32 %v1106, %v1111
        %v1113 = vmul.f32 %v1107, %v1111
        %v1114 = vlaneseq
        %v1115 = vshrl.u32 %v1114, 7
        %v1116 = vsub.s32 0, %v1115
        %v1117 = vrot.slane %v699, %v1116
        %v1118 = vadd.f32 %v1112, %v1117
        %v1119 = vadd.f32 %v1113, %v1117
        %v1120 = vpack.c.bf16 %v1119, %v1118
        %v1121 = vld [vmem:[#allocation16] sm:$0xf]
        %v1122 = vld [vmem:[#allocation16 + $0x4] sm:$0xf]
        %v1123 = vld [vmem:[#allocation16 + $0x8] sm:$0xf]
        %v1124 = vld [vmem:[#allocation16 + $0xc] sm:$0xf]
        %v1125 = vld [vmem:[#allocation17] sm:$0x1]
        %v1127 = vlaneseq
        %v1128 = vshrl.u32 %v1127, 7
        %v1129 = vsub.s32 0, %v1128
        %v1130 = vrot.slane %v1125, %v1129
        %v1136 = vunpack.c.l.b16 %v1121
        %v1137 = vunpack.c.l.b16 %v1122
        %v1138 = vunpack.c.l.b16 %v1123
        %v1139 = vunpack.c.l.b16 %v1124
        %v1140 = vpack.c.b16 %v1137, %v1136
        %v1141 = vpack.c.b16 %v1139, %v1138
        %v1145 = vsel %vm761, %v1120, 0
        %1147 = vmatprep.subr.bf16.mxu0 0
        %1148 = vmatpush1.bf16.msra.mxu0 %v1140
        %1149 = vmatprep.subr.bf16.mxu0 0
        %1150 = vmatpush1.bf16.msra.mxu0 %v1141
        %1151 = vmatprep.subr.bf16.mxu0 0
        %1152 = vmatpush1.bf16.msra.mxu0 0
        %1153 = vmatprep.subr.bf16.mxu0 0
        %1154 = vmatpush1.bf16.msra.mxu0 0
        %1155 = vmatprep.subr.bf16.mxu0 0
        %1156 = vmatpush1.bf16.msra.mxu0 0
        %1157 = vmatprep.subr.bf16.mxu0 0
        %1158 = vmatpush1.bf16.msra.mxu0 0
        %1159 = vmatprep.subr.bf16.mxu0 0
        %1160 = vmatpush1.bf16.msra.mxu0 0
        %1161 = vmatprep.subr.bf16.mxu0 0
        %1162 = vmatpush1.bf16.msra.mxu0 0
        %1163 = vmatprep.subr.bf16.mxu0 0
        %1164 = vmatpush1.bf16.msra.mxu0 0
        %1165 = vmatprep.subr.bf16.mxu0 0
        %1166 = vmatpush1.bf16.msra.mxu0 0
        %1167 = vmatprep.subr.bf16.mxu0 0
        %1168 = vmatpush1.bf16.msra.mxu0 0
        %1169 = vmatprep.subr.bf16.mxu0 0
        %1170 = vmatpush1.bf16.msra.mxu0 0
        %1171 = vmatprep.subr.bf16.mxu0 0
        %1172 = vmatpush1.bf16.msra.mxu0 0
        %1173 = vmatprep.subr.bf16.mxu0 0
        %1174 = vmatpush1.bf16.msra.mxu0 0
        %1175 = vmatprep.subr.bf16.mxu0 0
        %1176 = vmatpush1.bf16.msra.mxu0 0
        %1177 = vmatprep.subr.bf16.mxu0 0
        %1178 = vmatpush1.bf16.msra.mxu0 0
        %1179 = vmatprep.mubr.bf16.mxu0 0
        %1180 = vmatmul.mubr.bf16.gmra.mrb[0].mxu0 %v1145
        %v1181 = vpop.f32.mrb[0].mxu0
        %v1182 = vadd.f32 %v1130, %v1181
        %v1183 = vpop.f32.mrb[0].mxu0
        %v1184 = vpop.f32.mrb[0].mxu0
        %v1185 = vadd.f32 %v1130, %v1184
        %v1186 = vpop.f32.mrb[0].mxu0
        %1187 = vdwg.mxu0
        %v1188 = vpack.c.bf16 %v1185, %v1182
        %v1189 = vmul.bf16 %v1188, %v1188
        %v1190 = vmul.bf16 %v1188, %v1189
        %v1191 = vmul.bf16 %v1190, 1027030327
        %v1192 = vadd.bf16 %v1188, %v1191
        %v1193 = vmul.bf16 %v1192, 1061961548
        %v1194 = vtanh.bf16.pop %v1193
        %v1195 = vadd.bf16 %v1194, 1065369472
        %v1196 = vmul.bf16 %v1195, 1056980736
        %v1197 = vmul.bf16 %v1188, %v1196
        %v1198 = vld [vmem:[#allocation19] sm:$0xf]
        %v1199 = vld [vmem:[#allocation19 + $0x4] sm:$0xf]
        %v1200 = vld [vmem:[#allocation19 + $0x8] sm:$0xf]
        %v1201 = vld [vmem:[#allocation19 + $0xc] sm:$0xf]
        %v1202 = vld [vmem:[#allocation19 + $0x10] sm:$0xf]
        %v1203 = vld [vmem:[#allocation19 + $0x14] sm:$0xf]
        %v1204 = vld [vmem:[#allocation19 + $0x18] sm:$0xf]
        %v1205 = vld [vmem:[#allocation19 + $0x1c] sm:$0xf]
        %v1214 = vunpack.c.l.b16 %v1198
        %v1215 = vunpack.c.l.b16 %v1199
        %v1216 = vunpack.c.l.b16 %v1200
        %v1217 = vunpack.c.l.b16 %v1201
        %v1218 = vunpack.c.l.b16 %v1202
        %v1219 = vunpack.c.l.b16 %v1203
        %v1220 = vunpack.c.l.b16 %v1204
        %v1221 = vunpack.c.l.b16 %v1205
        %v1222 = vpack.c.b16 %v1215, %v1214
        %v1223 = vpack.c.b16 %v1217, %v1216
        %v1224 = vpack.c.b16 %v1219, %v1218
        %v1225 = vpack.c.b16 %v1221, %v1220
        %vm1230 = vcmask 523264
        %v1232 = vsel %vm1230, %v1197, 0
        %1234 = vmatprep.subr.bf16.mxu0 0
        %1235 = vmatpush1.bf16.msra.mxu0 %v1222
        %1236 = vmatprep.subr.bf16.mxu0 0
        %1237 = vmatpush1.bf16.msra.mxu0 %v1223
        %1238 = vmatprep.subr.bf16.mxu0 0
        %1239 = vmatpush1.bf16.msra.mxu0 %v1224
        %1240 = vmatprep.subr.bf16.mxu0 0
        %1241 = vmatpush1.bf16.msra.mxu0 %v1225
        %1242 = vmatprep.subr.bf16.mxu0 0
        %1243 = vmatpush1.bf16.msra.mxu0 0
        %1244 = vmatprep.subr.bf16.mxu0 0
        %1245 = vmatpush1.bf16.msra.mxu0 0
        %1246 = vmatprep.subr.bf16.mxu0 0
        %1247 = vmatpush1.bf16.msra.mxu0 0
        %1248 = vmatprep.subr.bf16.mxu0 0
        %1249 = vmatpush1.bf16.msra.mxu0 0
        %1250 = vmatprep.subr.bf16.mxu0 0
        %1251 = vmatpush1.bf16.msra.mxu0 0
        %1252 = vmatprep.subr.bf16.mxu0 0
        %1253 = vmatpush1.bf16.msra.mxu0 0
        %1254 = vmatprep.subr.bf16.mxu0 0
        %1255 = vmatpush1.bf16.msra.mxu0 0
        %1256 = vmatprep.subr.bf16.mxu0 0
        %1257 = vmatpush1.bf16.msra.mxu0 0
        %1258 = vmatprep.subr.bf16.mxu0 0
        %1259 = vmatpush1.bf16.msra.mxu0 0
        %1260 = vmatprep.subr.bf16.mxu0 0
        %1261 = vmatpush1.bf16.msra.mxu0 0
        %1262 = vmatprep.subr.bf16.mxu0 0
        %1263 = vmatpush1.bf16.msra.mxu0 0
        %1264 = vmatprep.subr.bf16.mxu0 0
        %1265 = vmatpush1.bf16.msra.mxu0 0
        %1266 = vmatprep.mubr.bf16.mxu0 0
        %1267 = vmatmul.mubr.bf16.gmra.mrb[0].mxu0 %v1232
        %v1268 = vpop.f32.mrb[0].mxu0
        %v1269 = vadd.f32 0.0, %v1268
        %v1270 = vpop.f32.mrb[0].mxu0
        %v1271 = vpop.f32.mrb[0].mxu0
        %v1272 = vadd.f32 0.0, %v1271
        %v1273 = vpop.f32.mrb[0].mxu0
        %1274 = vdwg.mxu0
        %v1275 = vadd.f32 %v1080, %v1269
        %v1276 = vadd.f32 %v1081, %v1272
        %v1277 = vlaneseq
        %v1278 = vshrl.u32 %v1277, 7
        %v1279 = vsub.s32 1, %v1278
        %v1280 = vrot.slane %v699, %v1279
        %v1281 = vadd.f32 %v1275, %v1280
        %v1282 = vadd.f32 %v1276, %v1280
        %v1283 = vpack.c.bf16 %v1282, %v1281
        %v1284 = vld [vmem:[#allocation20] sm:$0xf]
        %v1285 = vld [vmem:[#allocation20 + $0x4] sm:$0xf]
        %v1286 = vld [vmem:[#allocation20 + $0x8] sm:$0xf]
        %v1287 = vld [vmem:[#allocation20 + $0xc] sm:$0xf]
        %v1288 = vld [vmem:[#allocation22] sm:$0x1]
        %v1290 = vlaneseq
        %v1291 = vshrl.u32 %v1290, 7
        %v1292 = vsub.s32 0, %v1291
        %v1293 = vrot.slane %v1288, %v1292
        %v1299 = vunpack.c.l.b16 %v1284
        %v1300 = vunpack.c.l.b16 %v1285
        %v1301 = vunpack.c.l.b16 %v1286
        %v1302 = vunpack.c.l.b16 %v1287
        %v1303 = vpack.c.b16 %v1300, %v1299
        %v1304 = vpack.c.b16 %v1302, %v1301
        %v1308 = vsel %vm761, %v1283, 0
        %1310 = vmatprep.subr.bf16.mxu0 0
        %1311 = vmatpush1.bf16.msra.mxu0 %v1303
        %1312 = vmatprep.subr.bf16.mxu0 0
        %1313 = vmatpush1.bf16.msra.mxu0 %v1304
        %1314 = vmatprep.subr.bf16.mxu0 0
        %1315 = vmatpush1.bf16.msra.mxu0 0
        %1316 = vmatprep.subr.bf16.mxu0 0
        %1317 = vmatpush1.bf16.msra.mxu0 0
        %1318 = vmatprep.subr.bf16.mxu0 0
        %1319 = vmatpush1.bf16.msra.mxu0 0
        %1320 = vmatprep.subr.bf16.mxu0 0
        %1321 = vmatpush1.bf16.msra.mxu0 0
        %1322 = vmatprep.subr.bf16.mxu0 0
        %1323 = vmatpush1.bf16.msra.mxu0 0
        %1324 = vmatprep.subr.bf16.mxu0 0
        %1325 = vmatpush1.bf16.msra.mxu0 0
        %1326 = vmatprep.subr.bf16.mxu0 0
        %1327 = vmatpush1.bf16.msra.mxu0 0
        %1328 = vmatprep.subr.bf16.mxu0 0
        %1329 = vmatpush1.bf16.msra.mxu0 0
        %1330 = vmatprep.subr.bf16.mxu0 0
        %1331 = vmatpush1.bf16.msra.mxu0 0
        %1332 = vmatprep.subr.bf16.mxu0 0
        %1333 = vmatpush1.bf16.msra.mxu0 0
        %1334 = vmatprep.subr.bf16.mxu0 0
        %1335 = vmatpush1.bf16.msra.mxu0 0
        %1336 = vmatprep.subr.bf16.mxu0 0
        %1337 = vmatpush1.bf16.msra.mxu0 0
        %1338 = vmatprep.subr.bf16.mxu0 0
        %1339 = vmatpush1.bf16.msra.mxu0 0
        %1340 = vmatprep.subr.bf16.mxu0 0
        %1341 = vmatpush1.bf16.msra.mxu0 0
        %1342 = vmatprep.mubr.bf16.mxu0 0
        %1343 = vmatmul.mubr.bf16.gmra.mrb[0].mxu0 %v1308
        %v1344 = vpop.f32.mrb[0].mxu0
        %v1345 = vadd.f32 %v1293, %v1344
        %v1346 = vpop.f32.mrb[0].mxu0
        %v1347 = vpop.f32.mrb[0].mxu0
        %v1348 = vadd.f32 %v1293, %v1347
        %v1349 = vpop.f32.mrb[0].mxu0
        %1350 = vdwg.mxu0
        %v1351 = vpack.c.bf16 %v1348, %v1345
        %v1353 = vunpack.c.l.b16 %v1351
        %v1354 = vunpack.c.h.b16 %v1351
        %v1355 = vpack.c.b16 %v1353, %v1353
        %v1356 = vpack.c.b16 %v1354, %v1354
        %1359 = vst [vmem:[%s651] sm:$0xf] %v1355
        %1360 = vst [vmem:[%s651 + $0x4] sm:$0xf] %v1356
        %s1361 = sand.u32 %s329, 1
        %s1362 = scalar_lea.sflag [#allocation4], %s1361
        %s1363 = sand.u32 %s329, 1
        %s1364 = smul.addr %s1363, 8
        %s1365 = scalar_lea.vmem [#allocation23], %s1364
        // Predicated region
        $region125: #{tpu_custom_call.1} parent=71 // pred_check
          %p1366 = pneg %p339
        $region126: #{tpu_custom_call.1} parent=71 // pred_check_branch
          %1368 = sbr.rel (%p1366) target = $region128
        $region127: #{tpu_custom_call.1} parent=71 // pred_region
          %s1370 = ssub.s32 128, 128
          %1371 = vsyncadd %s1362, %s1370
          %s1372 = smul.addr %s38, 2
          %s1373 = smul.addr %s1372, 64
          %s1374 = scalar_lea.hbm %s13, %s1373
          %s1375 = sshll.u32 %s1365, 4
          %s1376 = int_to_ptr.vmem [resolvable:$true] %s1375
          %1381 = dma.vmem_to_hbm [thread:$0]  %s1376, 128, %s1374, %s1362, 64, 64, 4
        $region128: #{tpu_custom_call.1} parent=71 // pred_fallthru
          _
      $region72: #{tpu_custom_call.1} parent=5 // pred_fallthru
        _
      %p1382 = scmp.le.s32.totalorder 2, %s33
      // Predicated region
      $region129: #{tpu_custom_call.1} parent=5 // pred_check
        %p1383 = pneg %p1382
      $region130: #{tpu_custom_call.1} parent=5 // pred_check_branch
        %1385 = sbr.rel (%p1383) target = $region132
      $region131: #{tpu_custom_call.1} parent=5 // pred_region
        %s1386 = ssub.s32 %s33, 2
        // Predicated region
        $region133: #{tpu_custom_call.1} parent=131 // pred_check
          %p1387 = pneg %p345
        $region134: #{tpu_custom_call.1} parent=131 // pred_check_branch
          %1389 = sbr.rel (%p1387) target = $region136
        $region135: #{tpu_custom_call.1} parent=131 // pred_region
          %s1390 = sand.u32 %s330, 1
          %s1391 = scalar_lea.sflag [#allocation4], %s1390
          %s1392 = sand.u32 %s330, 1
          %s1393 = smul.addr %s1392, 8
          %s1394 = scalar_lea.vmem [#allocation23], %s1393
          %1395 = dma.done %s1391, 128
        $region136: #{tpu_custom_call.1} parent=131 // pred_fallthru
          _
      $region132: #{tpu_custom_call.1} parent=5 // pred_fallthru
        _
    $region6: #{tpu_custom_call.1} parent=1 // loop_footer
      %s37 = sadd.s32 1, %s33
    $region7: #{tpu_custom_call.1} parent=1 // loop_footer_branch
      %32 = sbr.rel target = $region3
    $region8: #{tpu_custom_call.1} parent=1 // loop_exit
      _
    %1396 = vsyncpa [#allocation3], 1
    %s1397 = scalar_lea.sflag [#allocation3], 1
    %1398 = vsyncpa %s1397, 1
    %1399 = vsyncpa [#allocation6], 1
    %s1400 = scalar_lea.sflag [#allocation6], 1
    %1401 = vsyncpa %s1400, 1
    %1402 = vsyncpa [#allocation9], 1
    %1403 = vsyncpa [#allocation12], 1
    %1404 = vsyncpa [#allocation15], 1
    %1405 = vsyncpa [#allocation18], 1
    %1406 = vsyncpa [#allocation21], 1
    %1407 = vsyncpa [#allocation4], 1
    %s1408 = scalar_lea.sflag [#allocation4], 1
    %1409 = vsyncpa %s1408, 1

</llo_original>
